<compile_context>
chip_gen: v7x
topology: tpu7x:2x2x1
jax: 0.10.0
libtpu: 0.0.40
codegen_flags: <defaults>
</compile_context>

<pallas_src>
import numpy as np
import jax
import jax.numpy as jnp
from jax import lax
from jax.experimental import pallas as pl
from jax.experimental.pallas import tpu as pltpu

IGNORE_FEATURE = -2
UNMATCHED_FEATURE = -1
_EPS = 1e-5
_BIG = 1e30          # sentinel distance for padded rows / columns


def _round_up(x, m):
    return ((x + m - 1) // m) * m


# ---------------------------------------------------------------------------
# Kernel: MXU pairwise distances + f32 reward + row stats + resident col stats
# ---------------------------------------------------------------------------
def _make_dist_kernel(TM, N0, N1, N1p, pos2, neg2):
    def kernel(a0_ref, b0_ref, a1_ref, b1_ref,          # VMEM inputs
               rew_ref,                                  # (1, TM, N1p) f32
               min0_ref, dmin0_ref, rmind0_ref,          # (1, TM, 1)
               min1_ref, dmin1_ref, cmind1_ref):         # (1, 1, N1p) resident
        t = pl.program_id(1)

        # d[i, j] = |p_i - q_j|^2 via one K=8 MXU matmul per side.
        d0 = jnp.dot(a0_ref[0], b0_ref[0], preferred_element_type=jnp.float32)
        d1 = jnp.dot(a1_ref[0], b1_ref[0], preferred_element_type=jnp.float32)

        row_iota = lax.broadcasted_iota(jnp.int32, (TM, 1), 0) + t * TM
        col_iota = lax.broadcasted_iota(jnp.int32, (1, N1p), 1)
        row_valid = row_iota < N0
        col_valid = col_iota < N1

        d0 = jnp.where(col_valid, d0, _BIG)      # padded columns -> huge
        d1 = jnp.where(row_valid, d1, _BIG)      # padded rows    -> huge
        dist = jnp.maximum(d0, d1)

        # reward in its final dtype; pad region forced to 0
        rew = (dist < pos2).astype(jnp.float32) - (dist > neg2).astype(jnp.float32)
        rew_ref[0] = jnp.where(jnp.logical_and(row_valid, col_valid), rew, 0.0)

        # ---- row (N0-side) statistics: lane reductions ----------------------
        col_f = col_iota.astype(jnp.float32)
        dmin0 = jnp.min(dist, axis=1, keepdims=True)                       # (TM,1)
        min0 = jnp.min(jnp.where(dist == dmin0, col_f, _BIG),
                       axis=1, keepdims=True)                              # first argmin
        min0_ref[0] = min0.astype(jnp.int32)
        dmin0_ref[0] = dmin0
        rmind0_ref[0] = jnp.min(d0, axis=1, keepdims=True)

        # ---- column (N1-side) statistics: accumulated across N0 tiles -------
        row_f = row_iota.astype(jnp.float32)
        cmin = jnp.min(dist, axis=0, keepdims=True)                        # (1,N1p)
        cargmin = jnp.min(jnp.where(dist == cmin, row_f, _BIG),
                          axis=0, keepdims=True).astype(jnp.int32)
        cmind1 = jnp.min(d1, axis=0, keepdims=True)

        @pl.when(t == 0)
        def _():
            dmin1_ref[0] = jnp.full((1, N1p), _BIG, jnp.float32)
            min1_ref[0] = jnp.zeros((1, N1p), jnp.int32)
            cmind1_ref[0] = jnp.full((1, N1p), _BIG, jnp.float32)

        upd = cmin < dmin1_ref[0]   # strict < keeps the first (lowest-row) argmin
        min1_ref[0] = jnp.where(upd, cargmin, min1_ref[0])
        dmin1_ref[0] = jnp.where(upd, cmin, dmin1_ref[0])
        cmind1_ref[0] = jnp.minimum(cmind1_ref[0], cmind1)

    return kernel


# ---------------------------------------------------------------------------
# Tiling / VMEM-limit selection (chip-aware)
# ---------------------------------------------------------------------------
def _choose_tiling(N0, N1, tile_m):
    N1p = _round_up(N1, 128)
    try:
        vmem_cap = int(pltpu.get_tpu_info().vmem_capacity_bytes)
    except Exception:
        vmem_cap = 64 * 1024 * 1024          # conservative (v7x per-core VMEM)
    budget = (vmem_cap * 3) // 5             # headroom for double buffering
    TM = max(128, tile_m)
    while TM > 128 and 12 * TM * N1p * 4 > budget:
        TM //= 2
    if N0 <= TM:
        TM = max(8, _round_up(N0, 8))
        N0p, nT = TM, 1
    else:
        N0p = _round_up(N0, TM)
        nT = N0p // TM
    vmem_limit = int(min(max(12 * TM * N1p * 4 + (2 << 20), 32 << 20),
                         (vmem_cap * 3) // 4))
    return TM, nT, N0p, N1p, vmem_limit


# ---------------------------------------------------------------------------
# Tiny O(N) XLA prep: homography algebra, warps, MXU operand packing
# ---------------------------------------------------------------------------
def _warp_points(points, M):
    ph = jnp.concatenate([points, jnp.ones_like(points[..., :1])], axis=-1)
    wp = jnp.einsum('bnj,bji->bni', ph, M)
    return wp[..., :2] / (wp[..., 2:3] + _EPS)


def _homography_mats(H, h, w):
    K = jnp.array([[1.0 / 0.8, 0.0, w / 2.0],
                   [0.0, 1.0 / 0.8, h / 2.0],
                   [0.0, 0.0, 1.0]], jnp.float32)
    Kinv = jnp.linalg.inv(K)
    M = jnp.einsum('ij,bjk,kl->bil', K, H.astype(jnp.float32), Kinv)
    M_fwd = jnp.swapaxes(M, 1, 2)            # inverse=False path (warps kp0)
    M_inv = jnp.linalg.inv(M_fwd)            # inverse=True  path (warps kp1)
    return M_fwd, M_inv


def _lhs_operand(p, center, n_pad):
    # rows [-2x, -2y, |p|^2, 1, 0,0,0,0]  ->  (B, Np, 8)
    pc = p - center
    sq = jnp.sum(pc * pc, axis=-1, keepdims=True)
    one = jnp.ones_like(sq)
    zero = jnp.zeros(p.shape[:-1] + (4,), p.dtype)
    a = jnp.concatenate([-2.0 * pc, sq, one, zero], axis=-1)
    return jnp.pad(a, ((0, 0), (0, n_pad), (0, 0)))


def _rhs_operand(q, center, n_pad):
    # columns [x, y, 1, |q|^2, 0,0,0,0]  ->  (B, 8, Np)
    qc = q - center
    sq = jnp.sum(qc * qc, axis=-1, keepdims=True)
    one = jnp.ones_like(sq)
    zero = jnp.zeros(q.shape[:-1] + (4,), q.dtype)
    b = jnp.concatenate([qc, one, sq, zero], axis=-1)
    return jnp.pad(jnp.swapaxes(b, 1, 2), ((0, 0), (0, 0), (0, n_pad)))


# ---------------------------------------------------------------------------
# Wrapper
# ---------------------------------------------------------------------------
def gt_matches_pallas(kp0, kp1, H, h, w, pos_th=3.0, neg_th=6.0, tile_m=512):
    assert tile_m % 128 == 0
    kp0 = kp0.astype(jnp.float32)
    kp1 = kp1.astype(jnp.float32)
    B, N0, _ = kp0.shape
    N1 = kp1.shape[1]
    pos2, neg2 = float(pos_th) ** 2, float(neg_th) ** 2

    if N0 == 0 or N1 == 0:
        m0 = -jnp.ones((B, N0), jnp.int32)
        m1 = -jnp.ones((B, N1), jnp.int32)
        return {'assignment': jnp.zeros((B, N0, N1), bool),
                'reward': jnp.zeros((B, N0, N1), jnp.float32),
                'matches0': m0, 'matches1': m1,
                'matching_scores0': jnp.zeros((B, N0), jnp.float32),
                'matching_scores1': jnp.zeros((B, N1), jnp.float32),
                'proj_0to1': kp0, 'proj_1to0': kp1}

    M_fwd, M_inv = _homography_mats(H, h, w)
    proj_0to1 = _warp_points(kp0, M_fwd)
    proj_1to0 = _warp_points(kp1, M_inv)

    TM, nT, N0p, N1p, vmem_limit = _choose_tiling(N0, N1, tile_m)
    center = jnp.array([w / 2.0, h / 2.0], jnp.float32)   # reduces cancellation
    a0 = _lhs_operand(proj_0to1, center, N0p - N0)   # dist0: warp(kp0) vs kp1
    b0 = _rhs_operand(kp1,       center, N1p - N1)
    a1 = _lhs_operand(kp0,       center, N0p - N0)   # dist1: kp0 vs warp(kp1)
    b1 = _rhs_operand(proj_1to0, center, N1p - N1)

    kernel = _make_dist_kernel(TM, N0, N1, N1p, pos2, neg2)
    row_map = lambda b, t: (b, t, 0)
    full_map = lambda b, t: (b, 0, 0)
    grid_spec = pltpu.PrefetchScalarGridSpec(
        num_scalar_prefetch=0,
        grid=(B, nT),
        in_specs=[pl.BlockSpec((1, TM, 8), row_map),
                  pl.BlockSpec((1, 8, N1p), full_map),
                  pl.BlockSpec((1, TM, 8), row_map),
                  pl.BlockSpec((1, 8, N1p), full_map)],
        out_specs=(pl.BlockSpec((1, TM, N1p), row_map),    # reward (f32, final)
                   pl.BlockSpec((1, TM, 1), row_map),      # row argmin
                   pl.BlockSpec((1, TM, 1), row_map),      # row min(dist)
                   pl.BlockSpec((1, TM, 1), row_map),      # row min(dist0)
                   pl.BlockSpec((1, 1, N1p), full_map),    # col argmin (resident)
                   pl.BlockSpec((1, 1, N1p), full_map),    # col min(dist) (resident)
                   pl.BlockSpec((1, 1, N1p), full_map)))   # col min(dist1) (resident)
    out_shape = (jax.ShapeDtypeStruct((B, N0p, N1p), jnp.float32),
                 jax.ShapeDtypeStruct((B, N0p, 1), jnp.int32),
                 jax.ShapeDtypeStruct((B, N0p, 1), jnp.float32),
                 jax.ShapeDtypeStruct((B, N0p, 1), jnp.float32),
                 jax.ShapeDtypeStruct((B, 1, N1p), jnp.int32),
                 jax.ShapeDtypeStruct((B, 1, N1p), jnp.float32),
                 jax.ShapeDtypeStruct((B, 1, N1p), jnp.float32))
    # TODO(synk): for B == 1 on v7x, add a leading "parallel" row-group split so
    # both TensorCores are used (merge per-group column stats in the epilogue).
    (rew_p, min0_p, dmin0_p, rmind0_p,
     min1_p, dmin1_p, cmind1_p) = pl.pallas_call(
        kernel, grid_spec=grid_spec, out_shape=out_shape,
        compiler_params=pltpu.CompilerParams(
            dimension_semantics=("parallel", "arbitrary"),
            vmem_limit_bytes=vmem_limit),
    )(a0, b0, a1, b1)

    # ------------- tiny O(B*N) finalization (data-dependent gathers) ---------
    min0 = min0_p[:, :N0, 0]
    dmin0 = dmin0_p[:, :N0, 0]
    rmind0 = rmind0_p[:, :N0, 0]
    min1 = min1_p[:, 0, :N1]
    dmin1 = dmin1_p[:, 0, :N1]
    cmind1 = cmind1_p[:, 0, :N1]

    row_ids = jnp.arange(N0, dtype=jnp.int32)
    col_ids = jnp.arange(N1, dtype=jnp.int32)
    any0 = (jnp.take_along_axis(min1, min0, axis=-1) == row_ids[None, :]) & (dmin0 < pos2)
    any1 = (jnp.take_along_axis(min0, min1, axis=-1) == col_ids[None, :]) & (dmin1 < pos2)

    m0 = jnp.where(any0, min0, IGNORE_FEATURE)
    m0 = jnp.where(rmind0 > neg2, UNMATCHED_FEATURE, m0)
    m1 = jnp.where(any1, min1, IGNORE_FEATURE)
    m1 = jnp.where(cmind1 > neg2, UNMATCHED_FEATURE, m1)

    # assignment reconstructed exactly from the row stats: one bool XLA pass
    assignment = (min0[:, :, None] == col_ids[None, None, :]) & any0[:, :, None]

    reward = rew_p if (N0p == N0 and N1p == N1) else rew_p[:, :N0, :N1]

    return {
        'assignment': assignment,
        'reward': reward,
        'matches0': m0,
        'matches1': m1,
        'matching_scores0': (m0 > -1).astype(jnp.float32),
        'matching_scores1': (m1 > -1).astype(jnp.float32),
        'proj_0to1': proj_0to1,
        'proj_1to0': proj_1to0,
    }


# ---------------------------------------------------------------------------
# Pure-JAX reference (mirror of the PyTorch code) for correctness checking
# ---------------------------------------------------------------------------
def _ref_gt_matches(kp0, kp1, H, h, w, pos_th=3.0, neg_th=6.0):
    M_fwd, M_inv = _homography_mats(H, h, w)
    kp0_1 = _warp_points(kp0.astype(jnp.float32), M_fwd)
    kp1_0 = _warp_points(kp1.astype(jnp.float32), M_inv)
    dist0 = jnp.sum((kp0_1[:, :, None, :] - kp1[:, None, :, :]) ** 2, -1)
    dist1 = jnp.sum((kp0[:, :, None, :] - kp1_0[:, None, :, :]) ** 2, -1)
    dist = jnp.maximum(dist0, dist1)
    pos2, neg2 = pos_th ** 2, neg_th ** 2
    reward = (dist < pos2).astype(jnp.float32) - (dist > neg2).astype(jnp.float32)
    min0 = jnp.argmin(dist, -1)
    min1 = jnp.argmin(dist, -2)
    N0, N1 = dist.shape[1], dist.shape[2]
    col = jnp.arange(N1)[None, None, :]
    row = jnp.arange(N0)[None, :, None]
    positive = (col == min0[:, :, None]) & (row == min1[:, None, :]) & (dist < pos2)
    negative0 = jnp.min(dist0, -1) > neg2
    negative1 = jnp.min(dist1, -2) > neg2
    m0 = jnp.where(positive.any(-1), min0, IGNORE_FEATURE)
    m1 = jnp.where(positive.any(-2), min1, IGNORE_FEATURE)
    m0 = jnp.where(negative0, UNMATCHED_FEATURE, m0)
    m1 = jnp.where(negative1, UNMATCHED_FEATURE, m1)
    return {'assignment': positive, 'reward': reward, 'matches0': m0, 'matches1': m1,
            'matching_scores0': (m0 > -1).astype(jnp.float32),
            'matching_scores1': (m1 > -1).astype(jnp.float32),
            'proj_0to1': kp0_1, 'proj_1to0': kp1_0}


def _make_inputs(key, B, N0, N1, h, w):
    k1, k2, k3, k4, k5 = jax.random.split(key, 5)
    scale = jnp.array([w - 1.0, h - 1.0], jnp.float32)
    kp0 = jax.random.uniform(k1, (B, N0, 2), jnp.float32) * scale
    kp1 = jax.random.uniform(k2, (B, N1, 2), jnp.float32) * scale
    theta = jax.random.uniform(k3, (B,), jnp.float32, -0.05, 0.05)
    tx = jax.random.uniform(k4, (B,), jnp.float32, -3.0, 3.0)
    ty = jax.random.uniform(k5, (B,), jnp.float32, -3.0, 3.0)
    c, s = jnp.cos(theta), jnp.sin(theta)
    z, o = jnp.zeros((B,), jnp.float32), jnp.ones((B,), jnp.float32)
    H = jnp.stack([jnp.stack([c, -s, tx], -1),
                   jnp.stack([s, c, ty], -1),
                   jnp.stack([z, z, o], -1)], axis=1)
    return kp0, kp1, H


def _check(out, ref, max_mismatch_frac=0.002, min_allowed=3):
    # Sub-ulp ordering differences (MXU distance expansion vs. direct form) can
    # flip a borderline threshold/argmin; allow a tiny disagreement budget.
    for k in ('assignment', 'reward', 'matches0', 'matches1',
              'matching_scores0', 'matching_scores1'):
        a, b = np.asarray(out[k]), np.asarray(ref[k])
        assert a.shape == b.shape, (k, a.shape, b.shape)
        n_bad = int(np.sum(a != b))
        allowed = max(min_allowed, int(max_mismatch_frac * a.size))
        assert n_bad <= allowed, (k, n_bad, allowed)
    for k in ('proj_0to1', 'proj_1to0'):
        assert np.allclose(np.asarray(out[k]), np.asarray(ref[k]), atol=1e-3), k


if __name__ == "__main__":
    h, w = 96, 248                       # has_detector=True branch of Pipeline.loss
    pos_th, neg_th = 3.0, 6.0
    key = jax.random.PRNGKey(0)
    ka, kb = jax.random.split(key)

    # small shapes (single-tile path)
    kp0, kp1, H = _make_inputs(ka, B=2, N0=16, N1=16, h=h, w=w)
    out = gt_matches_pallas(kp0, kp1, H, h, w, pos_th, neg_th)
    out = {k: jax.block_until_ready(v) for k, v in out.items()}
    _check(out, _ref_gt_matches(kp0, kp1, H, h, w, pos_th, neg_th))

    # larger shapes exercising the tiled resident-accumulator path + padding
    kp0b, kp1b, Hb = _make_inputs(kb, B=2, N0=200, N1=160, h=h, w=w)
    outb = gt_matches_pallas(kp0b, kp1b, Hb, h, w, pos_th, neg_th, tile_m=128)
    outb = {k: jax.block_until_ready(v) for k, v in outb.items()}
    _check(outb, _ref_gt_matches(kp0b, kp1b, Hb, h, w, pos_th, neg_th))

    print("KERNEL_OK")
</pallas_src>

<mosaic_0001>
module attributes {stable_mosaic.version = 11 : i64} {
  func.func @kernel(%arg0: i32, %arg1: i32, %arg2: memref<1x16x8xf32, #tpu.memory_space<vmem>>, %arg3: memref<1x8x128xf32, #tpu.memory_space<vmem>>, %arg4: memref<1x16x8xf32, #tpu.memory_space<vmem>>, %arg5: memref<1x8x128xf32, #tpu.memory_space<vmem>>, %arg6: memref<1x16x128xf32, #tpu.memory_space<vmem>>, %arg7: memref<1x16x1xi32, #tpu.memory_space<vmem>>, %arg8: memref<1x16x1xf32, #tpu.memory_space<vmem>>, %arg9: memref<1x16x1xf32, #tpu.memory_space<vmem>>, %arg10: memref<1x1x128xi32, #tpu.memory_space<vmem>>, %arg11: memref<1x1x128xf32, #tpu.memory_space<vmem>>, %arg12: memref<1x1x128xf32, #tpu.memory_space<vmem>>) attributes {dimension_semantics = [#tpu.dimension_semantics<parallel>, #tpu.dimension_semantics<arbitrary>], iteration_bounds = array<i64: 2, 1>, scalar_prefetch = 0 : i64, scratch_operands = 0 : i64, tpu.core_type = #tpu.core_type<tc>, window_params = [{transform_indices = @transform_0, window_bounds = array<i64: 1, 16, 8>}, {transform_indices = @transform_1, window_bounds = array<i64: 1, 8, 128>}, {transform_indices = @transform_2, window_bounds = array<i64: 1, 16, 8>}, {transform_indices = @transform_3, window_bounds = array<i64: 1, 8, 128>}, {transform_indices = @transform_4, window_bounds = array<i64: 1, 16, 128>}, {transform_indices = @transform_5, window_bounds = array<i64: 1, 16, 1>}, {transform_indices = @transform_6, window_bounds = array<i64: 1, 16, 1>}, {transform_indices = @transform_7, window_bounds = array<i64: 1, 16, 1>}, {transform_indices = @transform_8, window_bounds = array<i64: 1, 1, 128>}, {transform_indices = @transform_9, window_bounds = array<i64: 1, 1, 128>}, {transform_indices = @transform_10, window_bounds = array<i64: 1, 1, 128>}]} {
    %c0 = arith.constant 0 : index
    %c0_0 = arith.constant 0 : index
    %c0_1 = arith.constant 0 : index
    %0 = vector.load %arg2[%c0, %c0_0, %c0_1] : memref<1x16x8xf32, #tpu.memory_space<vmem>>, vector<1x16x8xf32>
    %1 = vector.shape_cast %0 : vector<1x16x8xf32> to vector<16x8xf32>
    %c0_2 = arith.constant 0 : index
    %c0_3 = arith.constant 0 : index
    %c0_4 = arith.constant 0 : index
    %2 = vector.load %arg3[%c0_2, %c0_3, %c0_4] : memref<1x8x128xf32, #tpu.memory_space<vmem>>, vector<1x8x128xf32>
    %3 = vector.shape_cast %2 : vector<1x8x128xf32> to vector<8x128xf32>
    %cst = arith.constant dense<0.000000e+00> : vector<16x128xf32>
    %4 = tpu.matmul %1, %3, %cst {dimension_numbers = #tpu.dot_dimension_numbers<[1], [0], [0], [1], [0, 0, 1, 1], [], []>} : vector<16x8xf32>, vector<8x128xf32>, vector<16x128xf32> -> vector<16x128xf32>
    %c0_5 = arith.constant 0 : index
    %c0_6 = arith.constant 0 : index
    %c0_7 = arith.constant 0 : index
    %5 = vector.load %arg4[%c0_5, %c0_6, %c0_7] : memref<1x16x8xf32, #tpu.memory_space<vmem>>, vector<1x16x8xf32>
    %6 = vector.shape_cast %5 : vector<1x16x8xf32> to vector<16x8xf32>
    %c0_8 = arith.constant 0 : index
    %c0_9 = arith.constant 0 : index
    %c0_10 = arith.constant 0 : index
    %7 = vector.load %arg5[%c0_8, %c0_9, %c0_10] : memref<1x8x128xf32, #tpu.memory_space<vmem>>, vector<1x8x128xf32>
    %8 = vector.shape_cast %7 : vector<1x8x128xf32> to vector<8x128xf32>
    %cst_11 = arith.constant dense<0.000000e+00> : vector<16x128xf32>
    %9 = tpu.matmul %6, %8, %cst_11 {dimension_numbers = #tpu.dot_dimension_numbers<[1], [0], [0], [1], [0, 0, 1, 1], [], []>} : vector<16x8xf32>, vector<8x128xf32>, vector<16x128xf32> -> vector<16x128xf32>
    %10 = tpu.iota {dimensions = array<i32: 0>} : vector<16x1xi32>
    %c16_i32 = arith.constant 16 : i32
    %11 = arith.muli %arg1, %c16_i32 : i32
    %12 = vector.broadcast %11 : i32 to vector<16x1xi32>
    %13 = arith.addi %10, %12 : vector<16x1xi32>
    %14 = tpu.iota {dimensions = array<i32: 1>} : vector<1x128xi32>
    %c16_i32_12 = arith.constant 16 : i32
    %15 = vector.broadcast %c16_i32_12 : i32 to vector<16x1xi32>
    %16 = arith.cmpi slt, %13, %15 : vector<16x1xi32>
    %c16_i32_13 = arith.constant 16 : i32
    %17 = vector.broadcast %c16_i32_13 : i32 to vector<1x128xi32>
    %18 = arith.cmpi slt, %14, %17 : vector<1x128xi32>
    %cst_14 = arith.constant 1.000000e+30 : f32
    %19 = vector.shape_cast %18 : vector<1x128xi1> to vector<1x128xi1>
    %20 = vector.broadcast %19 : vector<1x128xi1> to vector<16x128xi1>
    %21 = vector.broadcast %cst_14 : f32 to vector<16x128xf32>
    %22 = arith.select %20, %4, %21 : vector<16x128xi1>, vector<16x128xf32>
    %cst_15 = arith.constant 1.000000e+30 : f32
    %23 = vector.shape_cast %16 : vector<16x1xi1> to vector<16x1xi1>
    %24 = vector.broadcast %23 : vector<16x1xi1> to vector<16x128xi1>
    %25 = vector.broadcast %cst_15 : f32 to vector<16x128xf32>
    %26 = arith.select %24, %9, %25 : vector<16x128xi1>, vector<16x128xf32>
    %27 = arith.maximumf %22, %26 : vector<16x128xf32>
    %cst_16 = arith.constant 9.000000e+00 : f32
    %28 = vector.broadcast %cst_16 : f32 to vector<16x128xf32>
    %29 = arith.cmpf olt, %27, %28 : vector<16x128xf32>
    %30 = arith.extui %29 : vector<16x128xi1> to vector<16x128xi32>
    %31 = arith.sitofp %30 : vector<16x128xi32> to vector<16x128xf32>
    %cst_17 = arith.constant 3.600000e+01 : f32
    %32 = vector.broadcast %cst_17 : f32 to vector<16x128xf32>
    %33 = arith.cmpf ogt, %27, %32 : vector<16x128xf32>
    %34 = arith.extui %33 : vector<16x128xi1> to vector<16x128xi32>
    %35 = arith.sitofp %34 : vector<16x128xi32> to vector<16x128xf32>
    %36 = arith.subf %31, %35 : vector<16x128xf32>
    %37 = vector.broadcast %16 : vector<16x1xi1> to vector<16x128xi1>
    %38 = vector.broadcast %18 : vector<1x128xi1> to vector<16x128xi1>
    %39 = arith.andi %37, %38 : vector<16x128xi1>
    %cst_18 = arith.constant 0.000000e+00 : f32
    %40 = vector.broadcast %cst_18 : f32 to vector<16x128xf32>
    %41 = arith.select %39, %36, %40 : vector<16x128xi1>, vector<16x128xf32>
    %c0_19 = arith.constant 0 : index
    %c0_20 = arith.constant 0 : index
    %c0_21 = arith.constant 0 : index
    %42 = vector.load %arg6[%c0_19, %c0_20, %c0_21] : memref<1x16x128xf32, #tpu.memory_space<vmem>>, vector<1x16x128xf32>
    %43 = vector.shape_cast %42 : vector<1x16x128xf32> to vector<16x128xf32>
    %44 = vector.shape_cast %41 : vector<16x128xf32> to vector<1x16x128xf32>
    tpu.vector_store %arg6[%c0_19, %c0_20, %c0_21], %44 {strides = array<i32>} : memref<1x16x128xf32, #tpu.memory_space<vmem>>, vector<1x16x128xf32>,
    %45 = arith.sitofp %14 : vector<1x128xi32> to vector<1x128xf32>
    %cst_22 = arith.constant dense<0x7F800000> : vector<16xf32>
    %46 = vector.multi_reduction <minimumf>, %27, %cst_22 [1] : vector<16x128xf32> to vector<16xf32>
    %47 = vector.shape_cast %46 : vector<16xf32> to vector<16x1xf32>
    %48 = vector.broadcast %47 : vector<16x1xf32> to vector<16x128xf32>
    %49 = arith.cmpf oeq, %27, %48 : vector<16x128xf32>
    %cst_23 = arith.constant 1.000000e+30 : f32
    %50 = vector.shape_cast %45 : vector<1x128xf32> to vector<1x128xf32>
    %51 = vector.broadcast %50 : vector<1x128xf32> to vector<16x128xf32>
    %52 = vector.broadcast %cst_23 : f32 to vector<16x128xf32>
    %53 = arith.select %49, %51, %52 : vector<16x128xi1>, vector<16x128xf32>
    %cst_24 = arith.constant dense<0x7F800000> : vector<16xf32>
    %54 = vector.multi_reduction <minimumf>, %53, %cst_24 [1] : vector<16x128xf32> to vector<16xf32>
    %55 = vector.shape_cast %54 : vector<16xf32> to vector<16x1xf32>
    %56 = arith.fptosi %55 : vector<16x1xf32> to vector<16x1xi32>
    %c0_25 = arith.constant 0 : index
    %c0_26 = arith.constant 0 : index
    %c0_27 = arith.constant 0 : index
    %57 = vector.load %arg7[%c0_25, %c0_26, %c0_27] : memref<1x16x1xi32, #tpu.memory_space<vmem>>, vector<1x16x1xi32>
    %58 = vector.shape_cast %57 : vector<1x16x1xi32> to vector<16x1xi32>
    %59 = vector.shape_cast %56 : vector<16x1xi32> to vector<1x16x1xi32>
    tpu.vector_store %arg7[%c0_25, %c0_26, %c0_27], %59 {strides = array<i32>} : memref<1x16x1xi32, #tpu.memory_space<vmem>>, vector<1x16x1xi32>,
    %c0_28 = arith.constant 0 : index
    %c0_29 = arith.constant 0 : index
    %c0_30 = arith.constant 0 : index
    %60 = vector.load %arg8[%c0_28, %c0_29, %c0_30] : memref<1x16x1xf32, #tpu.memory_space<vmem>>, vector<1x16x1xf32>
    %61 = vector.shape_cast %60 : vector<1x16x1xf32> to vector<16x1xf32>
    %62 = vector.shape_cast %47 : vector<16x1xf32> to vector<1x16x1xf32>
    tpu.vector_store %arg8[%c0_28, %c0_29, %c0_30], %62 {strides = array<i32>} : memref<1x16x1xf32, #tpu.memory_space<vmem>>, vector<1x16x1xf32>,
    %cst_31 = arith.constant dense<0x7F800000> : vector<16xf32>
    %63 = vector.multi_reduction <minimumf>, %22, %cst_31 [1] : vector<16x128xf32> to vector<16xf32>
    %64 = vector.shape_cast %63 : vector<16xf32> to vector<16x1xf32>
    %c0_32 = arith.constant 0 : index
    %c0_33 = arith.constant 0 : index
    %c0_34 = arith.constant 0 : index
    %65 = vector.load %arg9[%c0_32, %c0_33, %c0_34] : memref<1x16x1xf32, #tpu.memory_space<vmem>>, vector<1x16x1xf32>
    %66 = vector.shape_cast %65 : vector<1x16x1xf32> to vector<16x1xf32>
    %67 = vector.shape_cast %64 : vector<16x1xf32> to vector<1x16x1xf32>
    tpu.vector_store %arg9[%c0_32, %c0_33, %c0_34], %67 {strides = array<i32>} : memref<1x16x1xf32, #tpu.memory_space<vmem>>, vector<1x16x1xf32>,
    %68 = arith.sitofp %13 : vector<16x1xi32> to vector<16x1xf32>
    %cst_35 = arith.constant dense<0x7F800000> : vector<128xf32>
    %69 = vector.multi_reduction <minimumf>, %27, %cst_35 [0] : vector<16x128xf32> to vector<128xf32>
    %70 = vector.shape_cast %69 : vector<128xf32> to vector<1x128xf32>
    %71 = vector.broadcast %70 : vector<1x128xf32> to vector<16x128xf32>
    %72 = arith.cmpf oeq, %27, %71 : vector<16x128xf32>
    %cst_36 = arith.constant 1.000000e+30 : f32
    %73 = vector.shape_cast %68 : vector<16x1xf32> to vector<16x1xf32>
    %74 = vector.broadcast %73 : vector<16x1xf32> to vector<16x128xf32>
    %75 = vector.broadcast %cst_36 : f32 to vector<16x128xf32>
    %76 = arith.select %72, %74, %75 : vector<16x128xi1>, vector<16x128xf32>
    %cst_37 = arith.constant dense<0x7F800000> : vector<128xf32>
    %77 = vector.multi_reduction <minimumf>, %76, %cst_37 [0] : vector<16x128xf32> to vector<128xf32>
    %78 = vector.shape_cast %77 : vector<128xf32> to vector<1x128xf32>
    %79 = arith.fptosi %78 : vector<1x128xf32> to vector<1x128xi32>
    %cst_38 = arith.constant dense<0x7F800000> : vector<128xf32>
    %80 = vector.multi_reduction <minimumf>, %26, %cst_38 [0] : vector<16x128xf32> to vector<128xf32>
    %81 = vector.shape_cast %80 : vector<128xf32> to vector<1x128xf32>
    %c0_i32 = arith.constant 0 : i32
    %82 = arith.cmpi eq, %arg1, %c0_i32 : i32
    %83 = arith.extui %82 : i1 to i32
    %c0_i32_39 = arith.constant 0 : i32
    %84 = arith.cmpi ne, %83, %c0_i32_39 : i32
    scf.if %84 {
      %cst_61 = arith.constant 1.000000e+30 : f32
      %106 = vector.broadcast %cst_61 : f32 to vector<1x128xf32>
      %c0_62 = arith.constant 0 : index
      %c0_63 = arith.constant 0 : index
      %c0_64 = arith.constant 0 : index
      %107 = vector.load %arg11[%c0_62, %c0_63, %c0_64] : memref<1x1x128xf32, #tpu.memory_space<vmem>>, vector<1x1x128xf32>
      %108 = vector.shape_cast %107 : vector<1x1x128xf32> to vector<1x128xf32>
      %109 = vector.shape_cast %106 : vector<1x128xf32> to vector<1x1x128xf32>
      tpu.vector_store %arg11[%c0_62, %c0_63, %c0_64], %109 {strides = array<i32>} : memref<1x1x128xf32, #tpu.memory_space<vmem>>, vector<1x1x128xf32>,
      %c0_i32_65 = arith.constant 0 : i32
      %110 = vector.broadcast %c0_i32_65 : i32 to vector<1x128xi32>
      %c0_66 = arith.constant 0 : index
      %c0_67 = arith.constant 0 : index
      %c0_68 = arith.constant 0 : index
      %111 = vector.load %arg10[%c0_66, %c0_67, %c0_68] : memref<1x1x128xi32, #tpu.memory_space<vmem>>, vector<1x1x128xi32>
      %112 = vector.shape_cast %111 : vector<1x1x128xi32> to vector<1x128xi32>
      %113 = vector.shape_cast %110 : vector<1x128xi32> to vector<1x1x128xi32>
      tpu.vector_store %arg10[%c0_66, %c0_67, %c0_68], %113 {strides = array<i32>} : memref<1x1x128xi32, #tpu.memory_space<vmem>>, vector<1x1x128xi32>,
      %cst_69 = arith.constant 1.000000e+30 : f32
      %114 = vector.broadcast %cst_69 : f32 to vector<1x128xf32>
      %c0_70 = arith.constant 0 : index
      %c0_71 = arith.constant 0 : index
      %c0_72 = arith.constant 0 : index
      %115 = vector.load %arg12[%c0_70, %c0_71, %c0_72] : memref<1x1x128xf32, #tpu.memory_space<vmem>>, vector<1x1x128xf32>
      %116 = vector.shape_cast %115 : vector<1x1x128xf32> to vector<1x128xf32>
      %117 = vector.shape_cast %114 : vector<1x128xf32> to vector<1x1x128xf32>
      tpu.vector_store %arg12[%c0_70, %c0_71, %c0_72], %117 {strides = array<i32>} : memref<1x1x128xf32, #tpu.memory_space<vmem>>, vector<1x1x128xf32>,
    } else {
    }
    %c0_40 = arith.constant 0 : index
    %c0_41 = arith.constant 0 : index
    %c0_42 = arith.constant 0 : index
    %85 = vector.load %arg11[%c0_40, %c0_41, %c0_42] : memref<1x1x128xf32, #tpu.memory_space<vmem>>, vector<1x1x128xf32>
    %86 = vector.shape_cast %85 : vector<1x1x128xf32> to vector<1x128xf32>
    %87 = arith.cmpf olt, %70, %86 : vector<1x128xf32>
    %c0_43 = arith.constant 0 : index
    %c0_44 = arith.constant 0 : index
    %c0_45 = arith.constant 0 : index
    %88 = vector.load %arg10[%c0_43, %c0_44, %c0_45] : memref<1x1x128xi32, #tpu.memory_space<vmem>>, vector<1x1x128xi32>
    %89 = vector.shape_cast %88 : vector<1x1x128xi32> to vector<1x128xi32>
    %90 = arith.select %87, %79, %89 : vector<1x128xi1>, vector<1x128xi32>
    %c0_46 = arith.constant 0 : index
    %c0_47 = arith.constant 0 : index
    %c0_48 = arith.constant 0 : index
    %91 = vector.load %arg10[%c0_46, %c0_47, %c0_48] : memref<1x1x128xi32, #tpu.memory_space<vmem>>, vector<1x1x128xi32>
    %92 = vector.shape_cast %91 : vector<1x1x128xi32> to vector<1x128xi32>
    %93 = vector.shape_cast %90 : vector<1x128xi32> to vector<1x1x128xi32>
    tpu.vector_store %arg10[%c0_46, %c0_47, %c0_48], %93 {strides = array<i32>} : memref<1x1x128xi32, #tpu.memory_space<vmem>>, vector<1x1x128xi32>,
    %c0_49 = arith.constant 0 : index
    %c0_50 = arith.constant 0 : index
    %c0_51 = arith.constant 0 : index
    %94 = vector.load %arg11[%c0_49, %c0_50, %c0_51] : memref<1x1x128xf32, #tpu.memory_space<vmem>>, vector<1x1x128xf32>
    %95 = vector.shape_cast %94 : vector<1x1x128xf32> to vector<1x128xf32>
    %96 = arith.select %87, %70, %95 : vector<1x128xi1>, vector<1x128xf32>
    %c0_52 = arith.constant 0 : index
    %c0_53 = arith.constant 0 : index
    %c0_54 = arith.constant 0 : index
    %97 = vector.load %arg11[%c0_52, %c0_53, %c0_54] : memref<1x1x128xf32, #tpu.memory_space<vmem>>, vector<1x1x128xf32>
    %98 = vector.shape_cast %97 : vector<1x1x128xf32> to vector<1x128xf32>
    %99 = vector.shape_cast %96 : vector<1x128xf32> to vector<1x1x128xf32>
    tpu.vector_store %arg11[%c0_52, %c0_53, %c0_54], %99 {strides = array<i32>} : memref<1x1x128xf32, #tpu.memory_space<vmem>>, vector<1x1x128xf32>,
    %c0_55 = arith.constant 0 : index
    %c0_56 = arith.constant 0 : index
    %c0_57 = arith.constant 0 : index
    %100 = vector.load %arg12[%c0_55, %c0_56, %c0_57] : memref<1x1x128xf32, #tpu.memory_space<vmem>>, vector<1x1x128xf32>
    %101 = vector.shape_cast %100 : vector<1x1x128xf32> to vector<1x128xf32>
    %102 = arith.minimumf %101, %81 : vector<1x128xf32>
    %c0_58 = arith.constant 0 : index
    %c0_59 = arith.constant 0 : index
    %c0_60 = arith.constant 0 : index
    %103 = vector.load %arg12[%c0_58, %c0_59, %c0_60] : memref<1x1x128xf32, #tpu.memory_space<vmem>>, vector<1x1x128xf32>
    %104 = vector.shape_cast %103 : vector<1x1x128xf32> to vector<1x128xf32>
    %105 = vector.shape_cast %102 : vector<1x128xf32> to vector<1x1x128xf32>
    tpu.vector_store %arg12[%c0_58, %c0_59, %c0_60], %105 {strides = array<i32>} : memref<1x1x128xf32, #tpu.memory_space<vmem>>, vector<1x1x128xf32>,
    return
  }
  func.func @transform_0(%arg0: i32, %arg1: i32) -> (i32, i32, i32) {
    %c0_i32 = arith.constant 0 : i32
    %c0_i32_0 = arith.constant 0 : i32
    return %arg0, %arg1, %c0_i32 : i32, i32, i32
  }
  func.func @transform_1(%arg0: i32, %arg1: i32) -> (i32, i32, i32) {
    %c0_i32 = arith.constant 0 : i32
    %c0_i32_0 = arith.constant 0 : i32
    %c0_i32_1 = arith.constant 0 : i32
    return %arg0, %c0_i32, %c0_i32_0 : i32, i32, i32
  }
  func.func @transform_2(%arg0: i32, %arg1: i32) -> (i32, i32, i32) {
    %c0_i32 = arith.constant 0 : i32
    %c0_i32_0 = arith.constant 0 : i32
    return %arg0, %arg1, %c0_i32 : i32, i32, i32
  }
  func.func @transform_3(%arg0: i32, %arg1: i32) -> (i32, i32, i32) {
    %c0_i32 = arith.constant 0 : i32
    %c0_i32_0 = arith.constant 0 : i32
    %c0_i32_1 = arith.constant 0 : i32
    return %arg0, %c0_i32, %c0_i32_0 : i32, i32, i32
  }
  func.func @transform_4(%arg0: i32, %arg1: i32) -> (i32, i32, i32) {
    %c0_i32 = arith.constant 0 : i32
    %c0_i32_0 = arith.constant 0 : i32
    return %arg0, %arg1, %c0_i32 : i32, i32, i32
  }
  func.func @transform_5(%arg0: i32, %arg1: i32) -> (i32, i32, i32) {
    %c0_i32 = arith.constant 0 : i32
    %c0_i32_0 = arith.constant 0 : i32
    return %arg0, %arg1, %c0_i32 : i32, i32, i32
  }
  func.func @transform_6(%arg0: i32, %arg1: i32) -> (i32, i32, i32) {
    %c0_i32 = arith.constant 0 : i32
    %c0_i32_0 = arith.constant 0 : i32
    return %arg0, %arg1, %c0_i32 : i32, i32, i32
  }
  func.func @transform_7(%arg0: i32, %arg1: i32) -> (i32, i32, i32) {
    %c0_i32 = arith.constant 0 : i32
    %c0_i32_0 = arith.constant 0 : i32
    return %arg0, %arg1, %c0_i32 : i32, i32, i32
  }
  func.func @transform_8(%arg0: i32, %arg1: i32) -> (i32, i32, i32) {
    %c0_i32 = arith.constant 0 : i32
    %c0_i32_0 = arith.constant 0 : i32
    %c0_i32_1 = arith.constant 0 : i32
    return %arg0, %c0_i32, %c0_i32_0 : i32, i32, i32
  }
  func.func @transform_9(%arg0: i32, %arg1: i32) -> (i32, i32, i32) {
    %c0_i32 = arith.constant 0 : i32
    %c0_i32_0 = arith.constant 0 : i32
    %c0_i32_1 = arith.constant 0 : i32
    return %arg0, %c0_i32, %c0_i32_0 : i32, i32, i32
  }
  func.func @transform_10(%arg0: i32, %arg1: i32) -> (i32, i32, i32) {
    %c0_i32 = arith.constant 0 : i32
    %c0_i32_0 = arith.constant 0 : i32
    %c0_i32_1 = arith.constant 0 : i32
    return %arg0, %c0_i32, %c0_i32_0 : i32, i32, i32
  }
}

</mosaic_0001>

<llo_original>
// kernel: tpu_custom_call.1
$region0: #{tpu_custom_call.1}
  #allocation0 [shape = 'u32[]', space=smem, size = 0x4, offset = 0x4, fixed_abs, tag = 'smem constant byte address 0x4 - core index']
  #allocation1 [shape = 'u32[144,128]{1,0:T(1,128)}', space=vmem, size = 0x12000, scoped, tag = 'internal scratch']
  %s0 = inlined_call_operand.vmem [shape: f32[2,16,8], index: 0, kind: input, shape index: {}]
  %s1 = inlined_call_operand.vmem [shape: f32[2,8,128], index: 1, kind: input, shape index: {}]
  %s2 = inlined_call_operand.vmem [shape: f32[2,16,8], index: 2, kind: input, shape index: {}]
  %s3 = inlined_call_operand.vmem [shape: f32[2,8,128], index: 3, kind: input, shape index: {}]
  %s4 = inlined_call_operand.hbm [shape: f32[2,16,128], index: 4, kind: output, shape index: {0}]
  %s5 = inlined_call_operand.vmem [shape: s32[2,16,1], index: 5, kind: output, shape index: {1}]
  %s6 = inlined_call_operand.vmem [shape: f32[2,16,1], index: 6, kind: output, shape index: {2}]
  %s7 = inlined_call_operand.vmem [shape: f32[2,16,1], index: 7, kind: output, shape index: {3}]
  %s8 = inlined_call_operand.hbm [shape: s32[2,1,128], index: 8, kind: output, shape index: {4}]
  %s9 = inlined_call_operand.hbm [shape: f32[2,1,128], index: 9, kind: output, shape index: {5}]
  %s10 = inlined_call_operand.hbm [shape: f32[2,1,128], index: 10, kind: output, shape index: {6}]
  %11 = xla_tuple %s4, %s5, %s6, %s7, %s8, %s9, %s10
  %s12 = sld [smem:[#allocation0]]
  $region101: #{tpu_custom_call.1} parent=0
    _
  %s14 = ssub.s32 1, %s12
  %s15 = scalar_select 0, %s14, %s12
  $region1: #{tpu_custom_call.1} parent=0
    #allocation2 [shape = 'u8[16384]{0}', space=vmem, size = 0x4000, scoped, tag = 'output window, operand 0']
    #allocation3 [shape = 's32[2]{0}', space=sflag, size = 0x8, scoped, tag = 'scoped memory for tpu_custom_call.1']
    #allocation4 [shape = 'u8[1024]{0}', space=vmem, size = 0x400, scoped, tag = 'output window, operand 4']
    #allocation5 [shape = 's32[2]{0}', space=sflag, size = 0x8, scoped, tag = 'scoped memory for tpu_custom_call.1']
    #allocation6 [shape = 'u8[1024]{0}', space=vmem, size = 0x400, scoped, tag = 'output window, operand 5']
    #allocation7 [shape = 'u8[1024]{0}', space=vmem, size = 0x400, scoped, tag = 'output window, operand 6']
    #allocation8 [shape = 's32[2]{0}', space=sflag, size = 0x8, scoped, tag = 'scoped memory for tpu_custom_call.1']
    %16 = vsyncpa [#allocation3], 0
    %s17 = scalar_lea.sflag [#allocation3], 1
    %18 = vsyncpa %s17, 0
    %19 = vsyncpa [#allocation5], 0
    %s20 = scalar_lea.sflag [#allocation5], 1
    %21 = vsyncpa %s20, 0
    %22 = vsyncpa [#allocation8], 0
    %s23 = scalar_lea.sflag [#allocation8], 1
    %24 = vsyncpa %s23, 0
    loop: start=0, step=1, limit=4
    $region2: #{tpu_custom_call.1} parent=1 // loop_pre_header
      _
    $region3: #{tpu_custom_call.1} parent=1 // loop_header
      %s26 = sphi 0, %s30
      %p27 = scmp.ge.s32.totalorder %s26, 4
      %s33 = sphi 0, %s45
      %s34 = sphi 0, %s41
      %s35 = sphi 0, %s33
      %s36 = sphi 0, %s34
      %s37 = sphi 0, %s35
      %s38 = sphi 0, %s36
      %s50 = sphi 0, %s52
      %s53 = sphi 0, %s50
      %s54 = sphi 0, %s53
      %s70 = sphi 0, %s54
      %s76 = sphi 0, %s78
      %s79 = sphi 0, %s76
      %s80 = sphi 0, %s79
      %s96 = sphi 0, %s80
      %s104 = sphi 0, %s106
      %s107 = sphi 0, %s104
      %s108 = sphi 0, %s107
      %s124 = sphi 0, %s108
      %s130 = sphi 0, %s132
      %s133 = sphi 0, %s130
      %s134 = sphi 0, %s133
      %s150 = sphi 0, %s134
      %s158 = sphi 0, %s160
      %s161 = sphi 0, %s158
      %s162 = sphi 0, %s161
      %s178 = sphi 0, %s162
      %s186 = sphi 0, %s188
      %s189 = sphi 0, %s186
      %s190 = sphi 0, %s189
      %s206 = sphi 0, %s190
      %s214 = sphi 0, %s216
      %s217 = sphi 0, %s214
      %s218 = sphi 0, %s217
      %s234 = sphi 0, %s218
      %s242 = sphi 0, %s244
      %s245 = sphi 0, %s242
      %s246 = sphi 0, %s245
      %s262 = sphi 0, %s246
      %s268 = sphi 0, %s270
      %s271 = sphi 0, %s268
      %s272 = sphi 0, %s271
      %s288 = sphi 0, %s272
      %s294 = sphi 0, %s296
      %s297 = sphi 0, %s294
      %s298 = sphi 0, %s297
      %s314 = sphi 0, %s298
      %s320 = sphi 0, %s322
      %s323 = sphi 0, %s320
      %s324 = sphi 0, %s323
      %s340 = sphi 0, %s324
    $region4: #{tpu_custom_call.1} parent=1 // loop_header_branch
      %29 = sbr.rel (%p27) target = $region8
    $region5: #{tpu_custom_call.1} parent=1 // loop_body
      %s31 = ssub.s32 %s26, 1
      %s32 = ssub.s32 %s26, 2
      %s39 = sadd.s32 1, %s34
      %p40 = scmp.ge.s32.totalorder %s39, 1
      %s41 = scalar_select %p40, 0, %s39
      %s42 = sadd.s32 1, %s33
      %s43 = scalar_select %p40, %s42, %s33
      %p44 = scmp.ge.s32.totalorder %s43, 2
      %s45 = scalar_select %p44, 0, %s43
      %s46 = ssub.s32 %s33, %s45
      %s47 = ssub.s32 %s34, %s41
      %s48 = sor.u32 %s46, %s47
      %p49 = scmp.eq.s32.totalorder %s48, 0
      %s51 = sadd.s32 %s50, 1
      %s52 = scalar_select %p49, %s50, %s51
      %p55 = pneg %p49
      %p56 = scmp.eq.s32.totalorder %s26, 1
      %p57 = por %p55, %p56
      %p58 = scmp.ne.s32.totalorder %s50, %s53
      %p59 = scmp.eq.s32.totalorder %s26, 0
      %p60 = por %p58, %p59
      %p61 = scmp.ne.s32.totalorder %s50, %s53
      %p62 = scmp.eq.s32.totalorder %s31, 1
      %p63 = por %p61, %p62
      %p64 = scmp.ne.s32.totalorder %s53, %s54
      %p65 = scmp.eq.s32.totalorder %s31, 0
      %p66 = por %p64, %p65
      %p67 = scmp.ne.s32.totalorder %s53, %s54
      %p68 = scmp.eq.s32.totalorder %s32, 1
      %p69 = por %p67, %p68
      %p71 = scmp.ne.s32.totalorder %s54, %s70
      %p72 = scmp.eq.s32.totalorder %s32, 0
      %p73 = por %p71, %p72
      %s74 = ssub.s32 %s33, %s45
      %p75 = scmp.eq.s32.totalorder %s74, 0
      %s77 = sadd.s32 %s76, 1
      %s78 = scalar_select %p75, %s76, %s77
      %p81 = pneg %p75
      %p82 = scmp.eq.s32.totalorder %s26, 1
      %p83 = por %p81, %p82
      %p84 = scmp.ne.s32.totalorder %s76, %s79
      %p85 = scmp.eq.s32.totalorder %s26, 0
      %p86 = por %p84, %p85
      %p87 = scmp.ne.s32.totalorder %s76, %s79
      %p88 = scmp.eq.s32.totalorder %s31, 1
      %p89 = por %p87, %p88
      %p90 = scmp.ne.s32.totalorder %s79, %s80
      %p91 = scmp.eq.s32.totalorder %s31, 0
      %p92 = por %p90, %p91
      %p93 = scmp.ne.s32.totalorder %s79, %s80
      %p94 = scmp.eq.s32.totalorder %s32, 1
      %p95 = por %p93, %p94
      %p97 = scmp.ne.s32.totalorder %s80, %s96
      %p98 = scmp.eq.s32.totalorder %s32, 0
      %p99 = por %p97, %p98
      %s100 = ssub.s32 %s33, %s45
      %s101 = ssub.s32 %s34, %s41
      %s102 = sor.u32 %s100, %s101
      %p103 = scmp.eq.s32.totalorder %s102, 0
      %s105 = sadd.s32 %s104, 1
      %s106 = scalar_select %p103, %s104, %s105
      %p109 = pneg %p103
      %p110 = scmp.eq.s32.totalorder %s26, 1
      %p111 = por %p109, %p110
      %p112 = scmp.ne.s32.totalorder %s104, %s107
      %p113 = scmp.eq.s32.totalorder %s26, 0
      %p114 = por %p112, %p113
      %p115 = scmp.ne.s32.totalorder %s104, %s107
      %p116 = scmp.eq.s32.totalorder %s31, 1
      %p117 = por %p115, %p116
      %p118 = scmp.ne.s32.totalorder %s107, %s108
      %p119 = scmp.eq.s32.totalorder %s31, 0
      %p120 = por %p118, %p119
      %p121 = scmp.ne.s32.totalorder %s107, %s108
      %p122 = scmp.eq.s32.totalorder %s32, 1
      %p123 = por %p121, %p122
      %p125 = scmp.ne.s32.totalorder %s108, %s124
      %p126 = scmp.eq.s32.totalorder %s32, 0
      %p127 = por %p125, %p126
      %s128 = ssub.s32 %s33, %s45
      %p129 = scmp.eq.s32.totalorder %s128, 0
      %s131 = sadd.s32 %s130, 1
      %s132 = scalar_select %p129, %s130, %s131
      %p135 = pneg %p129
      %p136 = scmp.eq.s32.totalorder %s26, 1
      %p137 = por %p135, %p136
      %p138 = scmp.ne.s32.totalorder %s130, %s133
      %p139 = scmp.eq.s32.totalorder %s26, 0
      %p140 = por %p138, %p139
      %p141 = scmp.ne.s32.totalorder %s130, %s133
      %p142 = scmp.eq.s32.totalorder %s31, 1
      %p143 = por %p141, %p142
      %p144 = scmp.ne.s32.totalorder %s133, %s134
      %p145 = scmp.eq.s32.totalorder %s31, 0
      %p146 = por %p144, %p145
      %p147 = scmp.ne.s32.totalorder %s133, %s134
      %p148 = scmp.eq.s32.totalorder %s32, 1
      %p149 = por %p147, %p148
      %p151 = scmp.ne.s32.totalorder %s134, %s150
      %p152 = scmp.eq.s32.totalorder %s32, 0
      %p153 = por %p151, %p152
      %s154 = ssub.s32 %s33, %s45
      %s155 = ssub.s32 %s34, %s41
      %s156 = sor.u32 %s154, %s155
      %p157 = scmp.eq.s32.totalorder %s156, 0
      %s159 = sadd.s32 %s158, 1
      %s160 = scalar_select %p157, %s158, %s159
      %p163 = pneg %p157
      %p164 = scmp.eq.s32.totalorder %s26, 1
      %p165 = por %p163, %p164
      %p166 = scmp.ne.s32.totalorder %s158, %s161
      %p167 = scmp.eq.s32.totalorder %s26, 0
      %p168 = por %p166, %p167
      %p169 = scmp.ne.s32.totalorder %s158, %s161
      %p170 = scmp.eq.s32.totalorder %s31, 1
      %p171 = por %p169, %p170
      %p172 = scmp.ne.s32.totalorder %s161, %s162
      %p173 = scmp.eq.s32.totalorder %s31, 0
      %p174 = por %p172, %p173
      %p175 = scmp.ne.s32.totalorder %s161, %s162
      %p176 = scmp.eq.s32.totalorder %s32, 1
      %p177 = por %p175, %p176
      %p179 = scmp.ne.s32.totalorder %s162, %s178
      %p180 = scmp.eq.s32.totalorder %s32, 0
      %p181 = por %p179, %p180
      %s182 = ssub.s32 %s33, %s45
      %s183 = ssub.s32 %s34, %s41
      %s184 = sor.u32 %s182, %s183
      %p185 = scmp.eq.s32.totalorder %s184, 0
      %s187 = sadd.s32 %s186, 1
      %s188 = scalar_select %p185, %s186, %s187
      %p191 = pneg %p185
      %p192 = scmp.eq.s32.totalorder %s26, 1
      %p193 = por %p191, %p192
      %p194 = scmp.ne.s32.totalorder %s186, %s189
      %p195 = scmp.eq.s32.totalorder %s26, 0
      %p196 = por %p194, %p195
      %p197 = scmp.ne.s32.totalorder %s186, %s189
      %p198 = scmp.eq.s32.totalorder %s31, 1
      %p199 = por %p197, %p198
      %p200 = scmp.ne.s32.totalorder %s189, %s190
      %p201 = scmp.eq.s32.totalorder %s31, 0
      %p202 = por %p200, %p201
      %p203 = scmp.ne.s32.totalorder %s189, %s190
      %p204 = scmp.eq.s32.totalorder %s32, 1
      %p205 = por %p203, %p204
      %p207 = scmp.ne.s32.totalorder %s190, %s206
      %p208 = scmp.eq.s32.totalorder %s32, 0
      %p209 = por %p207, %p208
      %s210 = ssub.s32 %s33, %s45
      %s211 = ssub.s32 %s34, %s41
      %s212 = sor.u32 %s210, %s211
      %p213 = scmp.eq.s32.totalorder %s212, 0
      %s215 = sadd.s32 %s214, 1
      %s216 = scalar_select %p213, %s214, %s215
      %p219 = pneg %p213
      %p220 = scmp.eq.s32.totalorder %s26, 1
      %p221 = por %p219, %p220
      %p222 = scmp.ne.s32.totalorder %s214, %s217
      %p223 = scmp.eq.s32.totalorder %s26, 0
      %p224 = por %p222, %p223
      %p225 = scmp.ne.s32.totalorder %s214, %s217
      %p226 = scmp.eq.s32.totalorder %s31, 1
      %p227 = por %p225, %p226
      %p228 = scmp.ne.s32.totalorder %s217, %s218
      %p229 = scmp.eq.s32.totalorder %s31, 0
      %p230 = por %p228, %p229
      %p231 = scmp.ne.s32.totalorder %s217, %s218
      %p232 = scmp.eq.s32.totalorder %s32, 1
      %p233 = por %p231, %p232
      %p235 = scmp.ne.s32.totalorder %s218, %s234
      %p236 = scmp.eq.s32.totalorder %s32, 0
      %p237 = por %p235, %p236
      %s238 = ssub.s32 %s33, %s45
      %s239 = ssub.s32 %s34, %s41
      %s240 = sor.u32 %s238, %s239
      %p241 = scmp.eq.s32.totalorder %s240, 0
      %s243 = sadd.s32 %s242, 1
      %s244 = scalar_select %p241, %s242, %s243
      %p247 = pneg %p241
      %p248 = scmp.eq.s32.totalorder %s26, 1
      %p249 = por %p247, %p248
      %p250 = scmp.ne.s32.totalorder %s242, %s245
      %p251 = scmp.eq.s32.totalorder %s26, 0
      %p252 = por %p250, %p251
      %p253 = scmp.ne.s32.totalorder %s242, %s245
      %p254 = scmp.eq.s32.totalorder %s31, 1
      %p255 = por %p253, %p254
      %p256 = scmp.ne.s32.totalorder %s245, %s246
      %p257 = scmp.eq.s32.totalorder %s31, 0
      %p258 = por %p256, %p257
      %p259 = scmp.ne.s32.totalorder %s245, %s246
      %p260 = scmp.eq.s32.totalorder %s32, 1
      %p261 = por %p259, %p260
      %p263 = scmp.ne.s32.totalorder %s246, %s262
      %p264 = scmp.eq.s32.totalorder %s32, 0
      %p265 = por %p263, %p264
      %s266 = ssub.s32 %s33, %s45
      %p267 = scmp.eq.s32.totalorder %s266, 0
      %s269 = sadd.s32 %s268, 1
      %s270 = scalar_select %p267, %s268, %s269
      %p273 = pneg %p267
      %p274 = scmp.eq.s32.totalorder %s26, 1
      %p275 = por %p273, %p274
      %p276 = scmp.ne.s32.totalorder %s268, %s271
      %p277 = scmp.eq.s32.totalorder %s26, 0
      %p278 = por %p276, %p277
      %p279 = scmp.ne.s32.totalorder %s268, %s271
      %p280 = scmp.eq.s32.totalorder %s31, 1
      %p281 = por %p279, %p280
      %p282 = scmp.ne.s32.totalorder %s271, %s272
      %p283 = scmp.eq.s32.totalorder %s31, 0
      %p284 = por %p282, %p283
      %p285 = scmp.ne.s32.totalorder %s271, %s272
      %p286 = scmp.eq.s32.totalorder %s32, 1
      %p287 = por %p285, %p286
      %p289 = scmp.ne.s32.totalorder %s272, %s288
      %p290 = scmp.eq.s32.totalorder %s32, 0
      %p291 = por %p289, %p290
      %s292 = ssub.s32 %s33, %s45
      %p293 = scmp.eq.s32.totalorder %s292, 0
      %s295 = sadd.s32 %s294, 1
      %s296 = scalar_select %p293, %s294, %s295
      %p299 = pneg %p293
      %p300 = scmp.eq.s32.totalorder %s26, 1
      %p301 = por %p299, %p300
      %p302 = scmp.ne.s32.totalorder %s294, %s297
      %p303 = scmp.eq.s32.totalorder %s26, 0
      %p304 = por %p302, %p303
      %p305 = scmp.ne.s32.totalorder %s294, %s297
      %p306 = scmp.eq.s32.totalorder %s31, 1
      %p307 = por %p305, %p306
      %p308 = scmp.ne.s32.totalorder %s297, %s298
      %p309 = scmp.eq.s32.totalorder %s31, 0
      %p310 = por %p308, %p309
      %p311 = scmp.ne.s32.totalorder %s297, %s298
      %p312 = scmp.eq.s32.totalorder %s32, 1
      %p313 = por %p311, %p312
      %p315 = scmp.ne.s32.totalorder %s298, %s314
      %p316 = scmp.eq.s32.totalorder %s32, 0
      %p317 = por %p315, %p316
      %s318 = ssub.s32 %s33, %s45
      %p319 = scmp.eq.s32.totalorder %s318, 0
      %s321 = sadd.s32 %s320, 1
      %s322 = scalar_select %p319, %s320, %s321
      %p325 = pneg %p319
      %p326 = scmp.eq.s32.totalorder %s26, 1
      %p327 = por %p325, %p326
      %p328 = scmp.ne.s32.totalorder %s320, %s323
      %p329 = scmp.eq.s32.totalorder %s26, 0
      %p330 = por %p328, %p329
      %p331 = scmp.ne.s32.totalorder %s320, %s323
      %p332 = scmp.eq.s32.totalorder %s31, 1
      %p333 = por %p331, %p332
      %p334 = scmp.ne.s32.totalorder %s323, %s324
      %p335 = scmp.eq.s32.totalorder %s31, 0
      %p336 = por %p334, %p335
      %p337 = scmp.ne.s32.totalorder %s323, %s324
      %p338 = scmp.eq.s32.totalorder %s32, 1
      %p339 = por %p337, %p338
      %p341 = scmp.ne.s32.totalorder %s324, %s340
      %p342 = scmp.eq.s32.totalorder %s32, 0
      %p343 = por %p341, %p342
      %p344 = scmp.le.s32.totalorder 1, %s26
      %p345 = scmp.lt.s32.totalorder %s26, 3
      %p346 = pnand %p344, %p345
      %p347 = pneg %p346
      // Predicated region
      $region9: #{tpu_custom_call.1} parent=5 // pred_check
        _
      $region10: #{tpu_custom_call.1} parent=5 // pred_check_branch
        %349 = sbr.rel (%p346) target = $region12
      $region11: #{tpu_custom_call.1} parent=5 // pred_region
        %s350 = ssub.s32 %s26, 1
      $region12: #{tpu_custom_call.1} parent=5 // pred_fallthru
        _
      %p351 = scmp.lt.s32.totalorder %s26, 2
      // Predicated region
      $region13: #{tpu_custom_call.1} parent=5 // pred_check
        %p352 = pneg %p351
      $region14: #{tpu_custom_call.1} parent=5 // pred_check_branch
        %354 = sbr.rel (%p352) target = $region16
      $region15: #{tpu_custom_call.1} parent=5 // pred_region
        // Predicated region
        $region17: #{tpu_custom_call.1} parent=15 // pred_check
          %p355 = pneg %p60
        $region18: #{tpu_custom_call.1} parent=15 // pred_check_branch
          %357 = sbr.rel (%p355) target = $region20
        $region19: #{tpu_custom_call.1} parent=15 // pred_region
          %s358 = smul.u32 2, %s34
          %p359 = scmp.lt.s32.totalorder %s33, 1
          %s360 = scalar_select %p359, %s33, 1
          %p361 = scmp.lt.s32.totalorder %s358, 1
          %s362 = scalar_select %p361, %s358, 1
          %s363 = smul.addr %s360, 2
          %s364 = sadd.s32 %s362, %s363
          %s365 = smul.addr %s364, 8
          %s366 = scalar_lea.vmem %s0, %s365
          %s367 = smul.u32 2, %s34
        $region20: #{tpu_custom_call.1} parent=15 // pred_fallthru
          _
        // Predicated region
        $region21: #{tpu_custom_call.1} parent=15 // pred_check
          %p368 = pneg %p86
        $region22: #{tpu_custom_call.1} parent=15 // pred_check_branch
          %370 = sbr.rel (%p368) target = $region24
        $region23: #{tpu_custom_call.1} parent=15 // pred_region
          %p371 = scmp.lt.s32.totalorder %s33, 1
          %s372 = scalar_select %p371, %s33, 1
          %s373 = smul.addr %s372, 8
          %s374 = scalar_lea.vmem %s1, %s373
        $region24: #{tpu_custom_call.1} parent=15 // pred_fallthru
          _
        // Predicated region
        $region25: #{tpu_custom_call.1} parent=15 // pred_check
          %p375 = pneg %p114
        $region26: #{tpu_custom_call.1} parent=15 // pred_check_branch
          %377 = sbr.rel (%p375) target = $region28
        $region27: #{tpu_custom_call.1} parent=15 // pred_region
          %s378 = smul.u32 2, %s34
          %p379 = scmp.lt.s32.totalorder %s33, 1
          %s380 = scalar_select %p379, %s33, 1
          %p381 = scmp.lt.s32.totalorder %s378, 1
          %s382 = scalar_select %p381, %s378, 1
          %s383 = smul.addr %s380, 2
          %s384 = sadd.s32 %s382, %s383
          %s385 = smul.addr %s384, 8
          %s386 = scalar_lea.vmem %s2, %s385
          %s387 = smul.u32 2, %s34
        $region28: #{tpu_custom_call.1} parent=15 // pred_fallthru
          _
        // Predicated region
        $region29: #{tpu_custom_call.1} parent=15 // pred_check
          %p388 = pneg %p140
        $region30: #{tpu_custom_call.1} parent=15 // pred_check_branch
          %390 = sbr.rel (%p388) target = $region32
        $region31: #{tpu_custom_call.1} parent=15 // pred_region
          %p391 = scmp.lt.s32.totalorder %s33, 1
          %s392 = scalar_select %p391, %s33, 1
          %s393 = smul.addr %s392, 8
          %s394 = scalar_lea.vmem %s3, %s393
        $region32: #{tpu_custom_call.1} parent=15 // pred_fallthru
          _
      $region16: #{tpu_custom_call.1} parent=5 // pred_fallthru
        _
      %p395 = scmp.le.s32.totalorder 1, %s26
      %p396 = scmp.lt.s32.totalorder %s26, 3
      %p397 = pnand %p395, %p396
      %p398 = pneg %p397
      // Predicated region
      $region33: #{tpu_custom_call.1} parent=5 // pred_check
        _
      $region34: #{tpu_custom_call.1} parent=5 // pred_check_branch
        %400 = sbr.rel (%p397) target = $region36
      $region35: #{tpu_custom_call.1} parent=5 // pred_region
        %s401 = ssub.s32 %s26, 1
        %s402 = smul.u32 2, %s36
        %p403 = scmp.lt.s32.totalorder %s35, 1
        %s404 = scalar_select %p403, %s35, 1
        %p405 = scmp.lt.s32.totalorder %s402, 1
        %s406 = scalar_select %p405, %s402, 1
        %s407 = smul.addr %s404, 2
        %s408 = sadd.s32 %s406, %s407
        %s409 = smul.addr %s408, 8
        %s410 = scalar_lea.vmem %s0, %s409
        %p411 = pneg %p66
        %p412 = pneg %p63
        %p413 = scmp.lt.s32.totalorder %s35, 1
        %s414 = scalar_select %p413, %s35, 1
        %s415 = smul.addr %s414, 8
        %s416 = scalar_lea.vmem %s1, %s415
        %p417 = pneg %p92
        %p418 = pneg %p89
        %s419 = smul.u32 2, %s36
        %p420 = scmp.lt.s32.totalorder %s35, 1
        %s421 = scalar_select %p420, %s35, 1
        %p422 = scmp.lt.s32.totalorder %s419, 1
        %s423 = scalar_select %p422, %s419, 1
        %s424 = smul.addr %s421, 2
        %s425 = sadd.s32 %s423, %s424
        %s426 = smul.addr %s425, 8
        %s427 = scalar_lea.vmem %s2, %s426
        %p428 = pneg %p120
        %p429 = pneg %p117
        %p430 = scmp.lt.s32.totalorder %s35, 1
        %s431 = scalar_select %p430, %s35, 1
        %s432 = smul.addr %s431, 8
        %s433 = scalar_lea.vmem %s3, %s432
        %p434 = pneg %p146
        %p435 = pneg %p143
        %p436 = pneg %p174
        %p437 = pneg %p171
        %s438 = sand.u32 %s161, 1
        %s439 = scalar_lea.sflag [#allocation3], %s438
        %s440 = sand.u32 %s161, 1
        %s441 = smul.addr %s440, 16
        %s442 = scalar_lea.vmem [#allocation2], %s441
        %p443 = pneg %p202
        %p444 = pneg %p199
        %s445 = smul.u32 2, %s36
        %p446 = scmp.lt.s32.totalorder %s35, 1
        %s447 = scalar_select %p446, %s35, 1
        %p448 = scmp.lt.s32.totalorder %s445, 1
        %s449 = scalar_select %p448, %s445, 1
        %s450 = smul.addr %s447, 2
        %s451 = sadd.s32 %s449, %s450
        %s452 = smul.addr %s451, 8
        %s453 = scalar_lea.vmem %s5, %s452
        %p454 = pneg %p230
        %p455 = pneg %p227
        %s456 = smul.u32 2, %s36
        %p457 = scmp.lt.s32.totalorder %s35, 1
        %s458 = scalar_select %p457, %s35, 1
        %p459 = scmp.lt.s32.totalorder %s456, 1
        %s460 = scalar_select %p459, %s456, 1
        %s461 = smul.addr %s458, 2
        %s462 = sadd.s32 %s460, %s461
        %s463 = smul.addr %s462, 8
        %s464 = scalar_lea.vmem %s6, %s463
        %p465 = pneg %p258
        %p466 = pneg %p255
        %s467 = smul.u32 2, %s36
        %p468 = scmp.lt.s32.totalorder %s35, 1
        %s469 = scalar_select %p468, %s35, 1
        %p470 = scmp.lt.s32.totalorder %s467, 1
        %s471 = scalar_select %p470, %s467, 1
        %s472 = smul.addr %s469, 2
        %s473 = sadd.s32 %s471, %s472
        %s474 = smul.addr %s473, 8
        %s475 = scalar_lea.vmem %s7, %s474
        %p476 = pneg %p284
        %p477 = pneg %p281
        %s478 = sand.u32 %s31, 1
        %s479 = scalar_lea.sflag [#allocation5], %s478
        %s480 = sand.u32 %s271, 1
        %s481 = scalar_lea.vmem [#allocation4], %s480
        %p482 = pneg %p310
        %p483 = pneg %p307
        %s484 = sand.u32 %s31, 1
        %s485 = scalar_lea.sflag [#allocation5], %s484
        %s486 = sand.u32 %s297, 1
        %s487 = scalar_lea.vmem [#allocation6], %s486
        %p488 = pneg %p336
        %p489 = pneg %p333
        %s490 = sand.u32 %s323, 1
        %s491 = scalar_lea.sflag [#allocation8], %s490
        %s492 = sand.u32 %s323, 1
        %s493 = scalar_lea.vmem [#allocation7], %s492
        %s494 = smul.u32 2, %s36
        %p495 = scmp.lt.s32.totalorder %s35, 1
        %s496 = scalar_select %p495, %s35, 1
        %p497 = scmp.lt.s32.totalorder %s494, 1
        %s498 = scalar_select %p497, %s494, 1
        %s499 = smul.addr %s496, 2
        %s500 = sadd.s32 %s498, %s499
        %s501 = smul.addr %s500, 8
        %s502 = scalar_lea.vmem %s0, %s501
        %s503 = smul.u32 2, %s36
        %p504 = scmp.lt.s32.totalorder %s35, 1
        %s505 = scalar_select %p504, %s35, 1
        %s506 = smul.addr %s505, 8
        %s507 = scalar_lea.vmem %s1, %s506
        %s508 = smul.u32 2, %s36
        %p509 = scmp.lt.s32.totalorder %s35, 1
        %s510 = scalar_select %p509, %s35, 1
        %p511 = scmp.lt.s32.totalorder %s508, 1
        %s512 = scalar_select %p511, %s508, 1
        %s513 = smul.addr %s510, 2
        %s514 = sadd.s32 %s512, %s513
        %s515 = smul.addr %s514, 8
        %s516 = scalar_lea.vmem %s2, %s515
        %s517 = smul.u32 2, %s36
        %p518 = scmp.lt.s32.totalorder %s35, 1
        %s519 = scalar_select %p518, %s35, 1
        %s520 = smul.addr %s519, 8
        %s521 = scalar_lea.vmem %s3, %s520
        %s522 = smul.u32 2, %s36
        %s523 = smul.u32 2, %s36
        %p524 = scmp.lt.s32.totalorder %s35, 1
        %s525 = scalar_select %p524, %s35, 1
        %p526 = scmp.lt.s32.totalorder %s523, 1
        %s527 = scalar_select %p526, %s523, 1
        %s528 = smul.addr %s525, 2
        %s529 = sadd.s32 %s527, %s528
        %s530 = smul.addr %s529, 8
        %s531 = scalar_lea.vmem %s5, %s530
        %s532 = smul.u32 2, %s36
        %s533 = smul.u32 2, %s36
        %p534 = scmp.lt.s32.totalorder %s35, 1
        %s535 = scalar_select %p534, %s35, 1
        %p536 = scmp.lt.s32.totalorder %s533, 1
        %s537 = scalar_select %p536, %s533, 1
        %s538 = smul.addr %s535, 2
        %s539 = sadd.s32 %s537, %s538
        %s540 = smul.addr %s539, 8
        %s541 = scalar_lea.vmem %s6, %s540
        %s542 = smul.u32 2, %s36
        %s543 = smul.u32 2, %s36
        %p544 = scmp.lt.s32.totalorder %s35, 1
        %s545 = scalar_select %p544, %s35, 1
        %p546 = scmp.lt.s32.totalorder %s543, 1
        %s547 = scalar_select %p546, %s543, 1
        %s548 = smul.addr %s545, 2
        %s549 = sadd.s32 %s547, %s548
        %s550 = smul.addr %s549, 8
        %s551 = scalar_lea.vmem %s7, %s550
        %s552 = smul.u32 2, %s36
        %v553 = vld [vmem:[%s502] sm:$0xff]
        %v554 = vld [vmem:[%s502 + $0x8] sm:$0xff]
        %v555 = vld [vmem:[%s507] sm:$0xff]
        %vm556 = vcmask 64512
        %v558 = vsel %vm556, %v553, 0
        %v561 = vsel %vm556, %v554, 0
        %563 = vmatprep.subr.mxu0 0.0
        %564 = vmatpush1.msra.mxu0 %v555
        %565 = vmatprep.subr.mxu0 0.0
        %566 = vmatpush1.msra.mxu0 0.0
        %567 = vmatprep.subr.mxu0 0.0
        %568 = vmatpush1.msra.mxu0 0.0
        %569 = vmatprep.subr.mxu0 0.0
        %570 = vmatpush1.msra.mxu0 0.0
        %571 = vmatprep.subr.mxu0 0.0
        %572 = vmatpush1.msra.mxu0 0.0
        %573 = vmatprep.subr.mxu0 0.0
        %574 = vmatpush1.msra.mxu0 0.0
        %575 = vmatprep.subr.mxu0 0.0
        %576 = vmatpush1.msra.mxu0 0.0
        %577 = vmatprep.subr.mxu0 0.0
        %578 = vmatpush1.msra.mxu0 0.0
        %579 = vmatprep.subr.mxu0 0.0
        %580 = vmatpush1.msra.mxu0 0.0
        %581 = vmatprep.subr.mxu0 0.0
        %582 = vmatpush1.msra.mxu0 0.0
        %583 = vmatprep.subr.mxu0 0.0
        %584 = vmatpush1.msra.mxu0 0.0
        %585 = vmatprep.subr.mxu0 0.0
        %586 = vmatpush1.msra.mxu0 0.0
        %587 = vmatprep.subr.mxu0 0.0
        %588 = vmatpush1.msra.mxu0 0.0
        %589 = vmatprep.subr.mxu0 0.0
        %590 = vmatpush1.msra.mxu0 0.0
        %591 = vmatprep.subr.mxu0 0.0
        %592 = vmatpush1.msra.mxu0 0.0
        %593 = vmatprep.subr.mxu0 0.0
        %594 = vmatpush1.msra.mxu0 0.0
        %595 = vmatprep.subr.mxu0 0.0
        %596 = vmatpush1.msra.mxu0 0.0
        %597 = vmatprep.subr.mxu0 0.0
        %598 = vmatpush1.msra.mxu0 0.0
        %599 = vmatprep.subr.mxu0 0.0
        %600 = vmatpush1.msra.mxu0 0.0
        %601 = vmatprep.subr.mxu0 0.0
        %602 = vmatpush1.msra.mxu0 0.0
        %603 = vmatprep.subr.mxu0 0.0
        %604 = vmatpush1.msra.mxu0 0.0
        %605 = vmatprep.subr.mxu0 0.0
        %606 = vmatpush1.msra.mxu0 0.0
        %607 = vmatprep.subr.mxu0 0.0
        %608 = vmatpush1.msra.mxu0 0.0
        %609 = vmatprep.subr.mxu0 0.0
        %610 = vmatpush1.msra.mxu0 0.0
        %611 = vmatprep.subr.mxu0 0.0
        %612 = vmatpush1.msra.mxu0 0.0
        %613 = vmatprep.subr.mxu0 0.0
        %614 = vmatpush1.msra.mxu0 0.0
        %615 = vmatprep.subr.mxu0 0.0
        %616 = vmatpush1.msra.mxu0 0.0
        %617 = vmatprep.subr.mxu0 0.0
        %618 = vmatpush1.msra.mxu0 0.0
        %619 = vmatprep.subr.mxu0 0.0
        %620 = vmatpush1.msra.mxu0 0.0
        %621 = vmatprep.subr.mxu0 0.0
        %622 = vmatpush1.msra.mxu0 0.0
        %623 = vmatprep.subr.mxu0 0.0
        %624 = vmatpush1.msra.mxu0 0.0
        %625 = vmatprep.subr.mxu0 0.0
        %626 = vmatpush1.msra.mxu0 0.0
        %627 = vmatprep.mubr.f32.mxu0 0.0
        %628 = vmatmul.mubr.f32.gmra.mrb[0].mxu0 %v558
        %v629 = vpop.f32.mrb[0].mxu0
        %v630 = vadd.f32 0.0, %v629
        %v631 = vpop.f32.mrb[0].mxu0
        %632 = vmatprep.mubr.f32.mxu0 0.0
        %633 = vmatmul.mubr.f32.gmra.mrb[0].mxu0 %v561
        %v634 = vpop.f32.mrb[0].mxu0
        %v635 = vadd.f32 0.0, %v634
        %v636 = vpop.f32.mrb[0].mxu0
        %637 = vdwg.mxu0
        %v638 = vld [vmem:[%s516] sm:$0xff]
        %v639 = vld [vmem:[%s516 + $0x8] sm:$0xff]
        %v640 = vld [vmem:[%s521] sm:$0xff]
        %v642 = vsel %vm556, %v638, 0
        %v645 = vsel %vm556, %v639, 0
        %647 = vmatprep.subr.mxu0 0.0
        %648 = vmatpush1.msra.mxu0 %v640
        %649 = vmatprep.subr.mxu0 0.0
        %650 = vmatpush1.msra.mxu0 0.0
        %651 = vmatprep.subr.mxu0 0.0
        %652 = vmatpush1.msra.mxu0 0.0
        %653 = vmatprep.subr.mxu0 0.0
        %654 = vmatpush1.msra.mxu0 0.0
        %655 = vmatprep.subr.mxu0 0.0
        %656 = vmatpush1.msra.mxu0 0.0
        %657 = vmatprep.subr.mxu0 0.0
        %658 = vmatpush1.msra.mxu0 0.0
        %659 = vmatprep.subr.mxu0 0.0
        %660 = vmatpush1.msra.mxu0 0.0
        %661 = vmatprep.subr.mxu0 0.0
        %662 = vmatpush1.msra.mxu0 0.0
        %663 = vmatprep.subr.mxu0 0.0
        %664 = vmatpush1.msra.mxu0 0.0
        %665 = vmatprep.subr.mxu0 0.0
        %666 = vmatpush1.msra.mxu0 0.0
        %667 = vmatprep.subr.mxu0 0.0
        %668 = vmatpush1.msra.mxu0 0.0
        %669 = vmatprep.subr.mxu0 0.0
        %670 = vmatpush1.msra.mxu0 0.0
        %671 = vmatprep.subr.mxu0 0.0
        %672 = vmatpush1.msra.mxu0 0.0
        %673 = vmatprep.subr.mxu0 0.0
        %674 = vmatpush1.msra.mxu0 0.0
        %675 = vmatprep.subr.mxu0 0.0
        %676 = vmatpush1.msra.mxu0 0.0
        %677 = vmatprep.subr.mxu0 0.0
        %678 = vmatpush1.msra.mxu0 0.0
        %679 = vmatprep.subr.mxu0 0.0
        %680 = vmatpush1.msra.mxu0 0.0
        %681 = vmatprep.subr.mxu0 0.0
        %682 = vmatpush1.msra.mxu0 0.0
        %683 = vmatprep.subr.mxu0 0.0
        %684 = vmatpush1.msra.mxu0 0.0
        %685 = vmatprep.subr.mxu0 0.0
        %686 = vmatpush1.msra.mxu0 0.0
        %687 = vmatprep.subr.mxu0 0.0
        %688 = vmatpush1.msra.mxu0 0.0
        %689 = vmatprep.subr.mxu0 0.0
        %690 = vmatpush1.msra.mxu0 0.0
        %691 = vmatprep.subr.mxu0 0.0
        %692 = vmatpush1.msra.mxu0 0.0
        %693 = vmatprep.subr.mxu0 0.0
        %694 = vmatpush1.msra.mxu0 0.0
        %695 = vmatprep.subr.mxu0 0.0
        %696 = vmatpush1.msra.mxu0 0.0
        %697 = vmatprep.subr.mxu0 0.0
        %698 = vmatpush1.msra.mxu0 0.0
        %699 = vmatprep.subr.mxu0 0.0
        %700 = vmatpush1.msra.mxu0 0.0
        %701 = vmatprep.subr.mxu0 0.0
        %702 = vmatpush1.msra.mxu0 0.0
        %703 = vmatprep.subr.mxu0 0.0
        %704 = vmatpush1.msra.mxu0 0.0
        %705 = vmatprep.subr.mxu0 0.0
        %706 = vmatpush1.msra.mxu0 0.0
        %707 = vmatprep.subr.mxu0 0.0
        %708 = vmatpush1.msra.mxu0 0.0
        %709 = vmatprep.subr.mxu0 0.0
        %710 = vmatpush1.msra.mxu0 0.0
        %711 = vmatprep.mubr.f32.mxu0 0.0
        %712 = vmatmul.mubr.f32.gmra.mrb[0].mxu0 %v642
        %v713 = vpop.f32.mrb[0].mxu0
        %v714 = vadd.f32 0.0, %v713
        %v715 = vpop.f32.mrb[0].mxu0
        %716 = vmatprep.mubr.f32.mxu0 0.0
        %717 = vmatmul.mubr.f32.gmra.mrb[0].mxu0 %v645
        %v718 = vpop.f32.mrb[0].mxu0
        %v719 = vadd.f32 0.0, %v718
        %v720 = vpop.f32.mrb[0].mxu0
        %721 = vdwg.mxu0
        %v722 = vlaneseq
        %v723 = vshrl.u32 %v722, 7
        %v724 = vadd.s32 %v723, 8
        %s725 = smul.u32 %s36, 16
        %v726 = vstv %s725
        %v727 = vadd.s32 %v723, %v726
        %v728 = vadd.s32 %v724, %v726
        %v729 = vlaneseq
        %v730 = vand.u32 %v729, 127
        %vm731 = vcmp.lt.s32.totalorder %v727, 16
        %vm732 = vcmp.lt.s32.totalorder %v728, 16
        %vm733 = vcmp.lt.s32.totalorder %v730, 16
        %v734 = vsel %vm733, 1, 0
        %vm735 = vcmp.eq.s32.totalorder %v734, 1
        %v736 = vsel %vm735, %v630, 1e+30
        %v737 = vsel %vm735, %v635, 1e+30
        %v738 = vsel %vm731, 1, 0
        %v739 = vsel %vm732, 1, 0
        %vm740 = vcmp.eq.s32.totalorder %v738, 1
        %vm741 = vcmp.eq.s32.totalorder %v739, 1
        %v742 = vsel %vm740, %v714, 1e+30
        %v743 = vsel %vm741, %v719, 1e+30
        %v744 = vmax.f32 %v736, %v742
        %v745 = vmax.f32 %v737, %v743
        %vm746 = vcmp.lt.f32.partialorder %v744, 9.0
        %vm747 = vcmp.lt.f32.partialorder %v745, 9.0
        %v748 = vsel %vm746, 1, 0
        %v749 = vsel %vm747, 1, 0
        %v750 = vcvt.s32.f32 %v748
        %v751 = vcvt.s32.f32 %v749
        %vm752 = vcmp.gt.f32.partialorder %v744, 36.0
        %vm753 = vcmp.gt.f32.partialorder %v745, 36.0
        %v754 = vsel %vm752, 1, 0
        %v755 = vsel %vm753, 1, 0
        %v756 = vcvt.s32.f32 %v754
        %v757 = vcvt.s32.f32 %v755
        %v758 = vsub.f32 %v750, %v756
        %v759 = vsub.f32 %v751, %v757
        %vm760 = vmand %vm740, %vm735
        %vm761 = vmand %vm741, %vm735
        %v762 = vsel %vm760, %v758, 0.0
        %v763 = vsel %vm761, %v759, 0.0
        %764 = vst [vmem:[%s442] sm:$0xff] %v762
        %765 = vst [vmem:[%s442 + $0x8] sm:$0xff] %v763
        %v766 = vcvt.s32.f32 %v730
        %767 = vmin.xlane.f32.xlu0 %v744
        %v768 = vpop.xlane.xlu0 %767
        %769 = vmin.xlane.f32.xlu0 %v745
        %v770 = vpop.xlane.xlu0 %769
        %vm771 = vcmp.eq.f32.partialorder %v744, %v768
        %vm772 = vcmp.eq.f32.partialorder %v745, %v770
        %v773 = vsel %vm771, %v766, 1e+30
        %v774 = vsel %vm772, %v766, 1e+30
        %775 = vmin.xlane.f32.xlu0 %v773
        %v776 = vpop.xlane.xlu0 %775
        %777 = vmin.xlane.f32.xlu0 %v774
        %v778 = vpop.xlane.xlu0 %777
        %v779 = vcvt.f32.s32.to.zero.pseudo %v776
        %v780 = vcvt.f32.s32.to.zero.pseudo %v778
        %vm781 = vcmask 7168
        %782 = vst.msk [vmem:[%s531] sm:$0xff] %vm781, %v779
        %783 = vst.msk [vmem:[%s531 + $0x8] sm:$0xff] %vm781, %v780
        %784 = vst.msk [vmem:[%s541] sm:$0xff] %vm781, %v768
        %785 = vst.msk [vmem:[%s541 + $0x8] sm:$0xff] %vm781, %v770
        %786 = vmin.xlane.f32.xlu0 %v736
        %v787 = vpop.xlane.xlu0 %786
        %788 = vmin.xlane.f32.xlu0 %v737
        %v789 = vpop.xlane.xlu0 %788
        %790 = vst.msk [vmem:[%s551] sm:$0xff] %vm781, %v787
        %791 = vst.msk [vmem:[%s551 + $0x8] sm:$0xff] %vm781, %v789
        %v792 = vcvt.s32.f32 %v727
        %v793 = vcvt.s32.f32 %v728
        %v794 = vmin.f32 %v744, %v745
        %v795 = vrot.slane %v794, 4
        %v796 = vmin.f32 %v794, %v795
        %v797 = vrot.slane %v796, 2
        %v798 = vmin.f32 %v796, %v797
        %v799 = vrot.slane %v798, 1
        %v800 = vmin.f32 %v798, %v799
        %vm801 = vcmp.eq.f32.partialorder %v744, %v800
        %vm802 = vcmp.eq.f32.partialorder %v745, %v800
        %v803 = vsel %vm801, %v792, 1e+30
        %v804 = vsel %vm802, %v793, 1e+30
        %v805 = vmin.f32 %v803, %v804
        %v806 = vrot.slane %v805, 4
        %v807 = vmin.f32 %v805, %v806
        %v808 = vrot.slane %v807, 2
        %v809 = vmin.f32 %v807, %v808
        %v810 = vrot.slane %v809, 1
        %v811 = vmin.f32 %v809, %v810
        %v812 = vcvt.f32.s32.to.zero.pseudo %v811
        %v813 = vmin.f32 %v742, %v743
        %v814 = vrot.slane %v813, 4
        %v815 = vmin.f32 %v813, %v814
        %v816 = vrot.slane %v815, 2
        %v817 = vmin.f32 %v815, %v816
        %v818 = vrot.slane %v817, 1
        %v819 = vmin.f32 %v817, %v818
        %p820 = scmp.eq.s32.totalorder %s36, 0
        // Predicated region
        $region37: #{tpu_custom_call.1} parent=35 // pred_check
          %p821 = pneg %p820
        $region38: #{tpu_custom_call.1} parent=35 // pred_check_branch
          %823 = sbr.rel (%p821) target = $region40
        $region39: #{tpu_custom_call.1} parent=35 // pred_region
          %824 = vst [vmem:[%s487] sm:$0x1] 1e+30
          %825 = vst [vmem:[%s481] sm:$0x1] 0
          %826 = vst [vmem:[%s493] sm:$0x1] 1e+30
        $region40: #{tpu_custom_call.1} parent=35 // pred_fallthru
          _
        %v827 = vld [vmem:[%s487] sm:$0x1]
        %vm828 = vcmp.lt.f32.partialorder %v800, %v827
        %v829 = vld [vmem:[%s481] sm:$0x1]
        %v830 = vsel %vm828, %v812, %v829
        %831 = vst [vmem:[%s481] sm:$0x1] %v830
        %v832 = vld [vmem:[%s487] sm:$0x1]
        %v833 = vsel %vm828, %v800, %v832
        %834 = vst [vmem:[%s487] sm:$0x1] %v833
        %v835 = vld [vmem:[%s493] sm:$0x1]
        %v836 = vmin.f32 %v835, %v819
        %837 = vst [vmem:[%s493] sm:$0x1] %v836
        %s838 = sand.u32 %s161, 1
        %s839 = scalar_lea.sflag [#allocation3], %s838
        %s840 = sand.u32 %s161, 1
        %s841 = smul.addr %s840, 16
        %s842 = scalar_lea.vmem [#allocation2], %s841
        %s843 = smul.u32 2, %s36
        %p844 = scmp.lt.s32.totalorder %s35, 1
        %s845 = scalar_select %p844, %s35, 1
        %p846 = scmp.lt.s32.totalorder %s843, 1
        %s847 = scalar_select %p846, %s843, 1
        %s848 = smul.addr %s845, 2
        %s849 = sadd.s32 %s847, %s848
        %s850 = smul.addr %s849, 8
        %s851 = scalar_lea.vmem %s5, %s850
        %s852 = smul.u32 2, %s36
        %p853 = scmp.lt.s32.totalorder %s35, 1
        %s854 = scalar_select %p853, %s35, 1
        %p855 = scmp.lt.s32.totalorder %s852, 1
        %s856 = scalar_select %p855, %s852, 1
        %s857 = smul.addr %s854, 2
        %s858 = sadd.s32 %s856, %s857
        %s859 = smul.addr %s858, 8
        %s860 = scalar_lea.vmem %s6, %s859
        %s861 = smul.u32 2, %s36
        %p862 = scmp.lt.s32.totalorder %s35, 1
        %s863 = scalar_select %p862, %s35, 1
        %p864 = scmp.lt.s32.totalorder %s861, 1
        %s865 = scalar_select %p864, %s861, 1
        %s866 = smul.addr %s863, 2
        %s867 = sadd.s32 %s865, %s866
        %s868 = smul.addr %s867, 8
        %s869 = scalar_lea.vmem %s7, %s868
        %s870 = sand.u32 %s31, 1
        %s871 = scalar_lea.sflag [#allocation5], %s870
        %s872 = sand.u32 %s271, 1
        %s873 = scalar_lea.vmem [#allocation4], %s872
        %s874 = sand.u32 %s31, 1
        %s875 = scalar_lea.sflag [#allocation5], %s874
        %s876 = sand.u32 %s297, 1
        %s877 = scalar_lea.vmem [#allocation6], %s876
        %s878 = sand.u32 %s323, 1
        %s879 = scalar_lea.sflag [#allocation8], %s878
        %s880 = sand.u32 %s323, 1
        %s881 = scalar_lea.vmem [#allocation7], %s880
        // Predicated region
        $region41: #{tpu_custom_call.1} parent=35 // pred_check
          %p882 = pneg %p171
        $region42: #{tpu_custom_call.1} parent=35 // pred_check_branch
          %884 = sbr.rel (%p882) target = $region44
        $region43: #{tpu_custom_call.1} parent=35 // pred_region
          %s885 = smul.u32 2, %s36
          %s887 = ssub.s32 256, 256
          %888 = vsyncadd %s839, %s887
          %s889 = smul.addr %s35, 2
          %s890 = sadd.s32 %s885, %s889
          %s891 = smul.addr %s890, 128
          %s892 = scalar_lea.hbm %s4, %s891
          %s893 = sshll.u32 %s842, 4
          %s894 = int_to_ptr.vmem [resolvable:$true] %s893
          %899 = dma.vmem_to_hbm [thread:$0]  %s894, 256, %s892, %s839, 128, 128, 8
        $region44: #{tpu_custom_call.1} parent=35 // pred_fallthru
          _
        // Predicated region
        $region45: #{tpu_custom_call.1} parent=35 // pred_check
          %p900 = pneg %p199
        $region46: #{tpu_custom_call.1} parent=35 // pred_check_branch
          %902 = sbr.rel (%p900) target = $region48
        $region47: #{tpu_custom_call.1} parent=35 // pred_region
          %s903 = smul.u32 2, %s36
        $region48: #{tpu_custom_call.1} parent=35 // pred_fallthru
          _
        // Predicated region
        $region49: #{tpu_custom_call.1} parent=35 // pred_check
          %p904 = pneg %p227
        $region50: #{tpu_custom_call.1} parent=35 // pred_check_branch
          %906 = sbr.rel (%p904) target = $region52
        $region51: #{tpu_custom_call.1} parent=35 // pred_region
          %s907 = smul.u32 2, %s36
        $region52: #{tpu_custom_call.1} parent=35 // pred_fallthru
          _
        // Predicated region
        $region53: #{tpu_custom_call.1} parent=35 // pred_check
          %p908 = pneg %p255
        $region54: #{tpu_custom_call.1} parent=35 // pred_check_branch
          %910 = sbr.rel (%p908) target = $region56
        $region55: #{tpu_custom_call.1} parent=35 // pred_region
          %s911 = smul.u32 2, %s36
        $region56: #{tpu_custom_call.1} parent=35 // pred_fallthru
          _
        // Predicated region
        $region57: #{tpu_custom_call.1} parent=35 // pred_check
          %p912 = pneg %p281
        $region58: #{tpu_custom_call.1} parent=35 // pred_check_branch
          %914 = sbr.rel (%p912) target = $region60
        $region59: #{tpu_custom_call.1} parent=35 // pred_region
          %s916 = ssub.s32 16, 16
          %917 = vsyncadd %s871, %s916
          %s918 = smul.addr %s35, 16
          %s919 = scalar_lea.hbm %s8, %s918
          %s921 = sshll.u32 %s873, 4
          %s922 = int_to_ptr.vmem [resolvable:$true] %s921
          %924 = dma.vmem_to_hbm [thread:$0]  %s922, 16, %s919, %s871
        $region60: #{tpu_custom_call.1} parent=35 // pred_fallthru
          _
        // Predicated region
        $region61: #{tpu_custom_call.1} parent=35 // pred_check
          %p925 = pneg %p307
        $region62: #{tpu_custom_call.1} parent=35 // pred_check_branch
          %927 = sbr.rel (%p925) target = $region64
        $region63: #{tpu_custom_call.1} parent=35 // pred_region
          %s929 = ssub.s32 16, 16
          %930 = vsyncadd %s875, %s929
          %s931 = smul.addr %s35, 16
          %s932 = scalar_lea.hbm %s9, %s931
          %s934 = sshll.u32 %s877, 4
          %s935 = int_to_ptr.vmem [resolvable:$true] %s934
          %937 = dma.vmem_to_hbm [thread:$0]  %s935, 16, %s932, %s875
        $region64: #{tpu_custom_call.1} parent=35 // pred_fallthru
          _
        // Predicated region
        $region65: #{tpu_custom_call.1} parent=35 // pred_check
          %p938 = pneg %p333
        $region66: #{tpu_custom_call.1} parent=35 // pred_check_branch
          %940 = sbr.rel (%p938) target = $region68
        $region67: #{tpu_custom_call.1} parent=35 // pred_region
          %s942 = ssub.s32 16, 16
          %943 = vsyncadd %s879, %s942
          %s944 = smul.addr %s35, 16
          %s945 = scalar_lea.hbm %s10, %s944
          %s947 = sshll.u32 %s881, 4
          %s948 = int_to_ptr.vmem [resolvable:$true] %s947
          %950 = dma.vmem_to_hbm [thread:$0]  %s948, 16, %s945, %s879
        $region68: #{tpu_custom_call.1} parent=35 // pred_fallthru
          _
      $region36: #{tpu_custom_call.1} parent=5 // pred_fallthru
        _
      %p951 = scmp.le.s32.totalorder 2, %s26
      // Predicated region
      $region69: #{tpu_custom_call.1} parent=5 // pred_check
        %p952 = pneg %p951
      $region70: #{tpu_custom_call.1} parent=5 // pred_check_branch
        %954 = sbr.rel (%p952) target = $region72
      $region71: #{tpu_custom_call.1} parent=5 // pred_region
        %s955 = ssub.s32 %s26, 2
        // Predicated region
        $region73: #{tpu_custom_call.1} parent=71 // pred_check
          %p956 = pneg %p177
        $region74: #{tpu_custom_call.1} parent=71 // pred_check_branch
          %958 = sbr.rel (%p956) target = $region76
        $region75: #{tpu_custom_call.1} parent=71 // pred_region
          %s959 = sand.u32 %s162, 1
          %s960 = scalar_lea.sflag [#allocation3], %s959
          %s961 = sand.u32 %s162, 1
          %s962 = smul.addr %s961, 16
          %s963 = scalar_lea.vmem [#allocation2], %s962
          %964 = dma.done %s960, 256
        $region76: #{tpu_custom_call.1} parent=71 // pred_fallthru
          _
        // Predicated region
        $region77: #{tpu_custom_call.1} parent=71 // pred_check
          %p965 = pneg %p205
        $region78: #{tpu_custom_call.1} parent=71 // pred_check_branch
          %967 = sbr.rel (%p965) target = $region80
        $region79: #{tpu_custom_call.1} parent=71 // pred_region
          %s968 = smul.u32 2, %s38
          %p969 = scmp.lt.s32.totalorder %s37, 1
          %s970 = scalar_select %p969, %s37, 1
          %p971 = scmp.lt.s32.totalorder %s968, 1
          %s972 = scalar_select %p971, %s968, 1
          %s973 = smul.addr %s970, 2
          %s974 = sadd.s32 %s972, %s973
          %s975 = smul.addr %s974, 8
          %s976 = scalar_lea.vmem %s5, %s975
        $region80: #{tpu_custom_call.1} parent=71 // pred_fallthru
          _
        // Predicated region
        $region81: #{tpu_custom_call.1} parent=71 // pred_check
          %p977 = pneg %p233
        $region82: #{tpu_custom_call.1} parent=71 // pred_check_branch
          %979 = sbr.rel (%p977) target = $region84
        $region83: #{tpu_custom_call.1} parent=71 // pred_region
          %s980 = smul.u32 2, %s38
          %p981 = scmp.lt.s32.totalorder %s37, 1
          %s982 = scalar_select %p981, %s37, 1
          %p983 = scmp.lt.s32.totalorder %s980, 1
          %s984 = scalar_select %p983, %s980, 1
          %s985 = smul.addr %s982, 2
          %s986 = sadd.s32 %s984, %s985
          %s987 = smul.addr %s986, 8
          %s988 = scalar_lea.vmem %s6, %s987
        $region84: #{tpu_custom_call.1} parent=71 // pred_fallthru
          _
        // Predicated region
        $region85: #{tpu_custom_call.1} parent=71 // pred_check
          %p989 = pneg %p261
        $region86: #{tpu_custom_call.1} parent=71 // pred_check_branch
          %991 = sbr.rel (%p989) target = $region88
        $region87: #{tpu_custom_call.1} parent=71 // pred_region
          %s992 = smul.u32 2, %s38
          %p993 = scmp.lt.s32.totalorder %s37, 1
          %s994 = scalar_select %p993, %s37, 1
          %p995 = scmp.lt.s32.totalorder %s992, 1
          %s996 = scalar_select %p995, %s992, 1
          %s997 = smul.addr %s994, 2
          %s998 = sadd.s32 %s996, %s997
          %s999 = smul.addr %s998, 8
          %s1000 = scalar_lea.vmem %s7, %s999
        $region88: #{tpu_custom_call.1} parent=71 // pred_fallthru
          _
        // Predicated region
        $region89: #{tpu_custom_call.1} parent=71 // pred_check
          %p1001 = pneg %p287
        $region90: #{tpu_custom_call.1} parent=71 // pred_check_branch
          %1003 = sbr.rel (%p1001) target = $region92
        $region91: #{tpu_custom_call.1} parent=71 // pred_region
          %s1004 = sand.u32 %s32, 1
          %s1005 = scalar_lea.sflag [#allocation5], %s1004
          %s1006 = sand.u32 %s272, 1
          %s1007 = scalar_lea.vmem [#allocation4], %s1006
          %1008 = dma.done %s1005, 16
        $region92: #{tpu_custom_call.1} parent=71 // pred_fallthru
          _
        // Predicated region
        $region93: #{tpu_custom_call.1} parent=71 // pred_check
          %p1009 = pneg %p313
        $region94: #{tpu_custom_call.1} parent=71 // pred_check_branch
          %1011 = sbr.rel (%p1009) target = $region96
        $region95: #{tpu_custom_call.1} parent=71 // pred_region
          %s1012 = sand.u32 %s32, 1
          %s1013 = scalar_lea.sflag [#allocation5], %s1012
          %s1014 = sand.u32 %s298, 1
          %s1015 = scalar_lea.vmem [#allocation6], %s1014
          %1016 = dma.done %s1013, 16
        $region96: #{tpu_custom_call.1} parent=71 // pred_fallthru
          _
        // Predicated region
        $region97: #{tpu_custom_call.1} parent=71 // pred_check
          %p1017 = pneg %p339
        $region98: #{tpu_custom_call.1} parent=71 // pred_check_branch
          %1019 = sbr.rel (%p1017) target = $region100
        $region99: #{tpu_custom_call.1} parent=71 // pred_region
          %s1020 = sand.u32 %s324, 1
          %s1021 = scalar_lea.sflag [#allocation8], %s1020
          %s1022 = sand.u32 %s324, 1
          %s1023 = scalar_lea.vmem [#allocation7], %s1022
          %1024 = dma.done %s1021, 16
        $region100: #{tpu_custom_call.1} parent=71 // pred_fallthru
          _
      $region72: #{tpu_custom_call.1} parent=5 // pred_fallthru
        _
    $region6: #{tpu_custom_call.1} parent=1 // loop_footer
      %s30 = sadd.s32 1, %s26
    $region7: #{tpu_custom_call.1} parent=1 // loop_footer_branch
      %25 = sbr.rel target = $region3
    $region8: #{tpu_custom_call.1} parent=1 // loop_exit
      _
    %1025 = vsyncpa [#allocation3], 1
    %s1026 = scalar_lea.sflag [#allocation3], 1
    %1027 = vsyncpa %s1026, 1
    %1028 = vsyncpa [#allocation5], 1
    %s1029 = scalar_lea.sflag [#allocation5], 1
    %1030 = vsyncpa %s1029, 1
    %1031 = vsyncpa [#allocation8], 1
    %s1032 = scalar_lea.sflag [#allocation8], 1
    %1033 = vsyncpa %s1032, 1

</llo_original>
